<compile_context>
chip_gen: v5e
topology: v5e:2x2
jax: 0.10.0
libtpu: 0.0.40
codegen_flags: <defaults>
</compile_context>

<pallas_src>
import functools

import jax
import jax.numpy as jnp
import numpy as np
from jax import lax
from jax.experimental import pallas as pl
from jax.experimental.pallas import tpu as pltpu


# ----------------------------------------------------------------------------
# Fused Pallas kernel
# ----------------------------------------------------------------------------
def _make_csnet_kernel(num_layers):
    """Build the fused CSNET kernel for a fixed number of LSTM layers.

    Positional ref layout:
      x_ref                      : [T, D0]    layer-0 input
      per layer l (3 refs each):
        wih_ref : [D_l, 8H]  packed input->gate weights, both directions
        whh_ref : [2H, 8H]   block-diagonal hidden->gate weights
        b_ref   : [1, 8H]    packed combined bias (b_ih + b_hh), both dirs
      wh_ref   : [2H, 128]   head weight (real column in lane 0, rest zero)
      bh_ref   : [1, 128]    head bias   (real value in lane 0)
      out_ref  : [T, 128]    sigmoid scores in lane 0 (lane-dense output)
    """

    def kernel(*refs):
        x_ref = refs[0]
        layer_refs = refs[1:1 + 3 * num_layers]
        wh_ref = refs[1 + 3 * num_layers]
        bh_ref = refs[2 + 3 * num_layers]
        out_ref = refs[3 + 3 * num_layers]

        T = x_ref.shape[0]
        layer_in = x_ref[...]                                     # [T, D0]

        for l in range(num_layers):
            wih_ref = layer_refs[3 * l]
            whh_ref = layer_refs[3 * l + 1]
            b_ref = layer_refs[3 * l + 2]
            H = whh_ref.shape[0] // 2
            G = 8 * H

            # Hoisted input projection for BOTH directions: one matmul (f32,
            # off the serial critical path).
            xw = jnp.dot(layer_in, wih_ref[...],
                         preferred_element_type=jnp.float32) + b_ref[...]   # [T, 8H]

            # Static per-lane direction mask (fwd lanes = first H of each 2H
            # gate group).  Built once per layer.
            lane = lax.broadcasted_iota(jnp.int32, (1, G), 1)
            is_fwd = lane < H
            for q in range(1, 4):
                lo = q * 2 * H
                is_fwd = is_fwd | ((lane >= lo) & (lane < lo + H))

            # Hoisted direction mixing: fwd lanes read time s, bwd lanes read
            # time T-1-s.  All T mixed rows are built BEFORE the recurrence so
            # no select sits inside the serial loop.
            xrows = [jnp.where(is_fwd, xw[s:s + 1, :], xw[T - 1 - s:T - s, :])
                     for s in range(T)]

            # bf16 weight copy for the recurrence matmul (cast once per layer).
            whh_bf = whh_ref[...].astype(jnp.bfloat16)            # [2H, 8H]

            h = jnp.zeros((1, 2 * H), jnp.float32)                # [h_f | h_b]
            c = jnp.zeros((1, 2 * H), jnp.float32)
            h_f_rows = [None] * T
            h_b_rows = [None] * T

            for s in range(T):   # static, fully-unrolled recurrence (T small)
                gates = xrows[s] + jnp.dot(h.astype(jnp.bfloat16), whh_bf,
                                           preferred_element_type=jnp.float32)  # [1,8H]

                # One full-width sigmoid pass (I/F/O lanes used, G lanes
                # ignored) + one small tanh over the G lanes.  No select.
                sg = jax.nn.sigmoid(gates)
                g_g = jnp.tanh(gates[:, 6 * H:8 * H])
                i_g = sg[:, 0:2 * H]
                f_g = sg[:, 2 * H:4 * H]
                o_g = sg[:, 4 * H:6 * H]

                c = f_g * c + i_g * g_g
                h = o_g * jnp.tanh(c)

                # Keep layer outputs in registers: fwd half is time s, bwd
                # half is time T-1-s.
                h_f_rows[s] = h[:, 0:H]
                h_b_rows[T - 1 - s] = h[:, H:2 * H]

            layer_in = jnp.concatenate(
                [jnp.concatenate(h_f_rows, axis=0),
                 jnp.concatenate(h_b_rows, axis=0)], axis=1)      # [T, 2H]

        # Fused scoring head, lane-dense output (scores live in lane 0).
        logits = jnp.dot(layer_in, wh_ref[...],
                         preferred_element_type=jnp.float32) + bh_ref[...]
        out_ref[...] = jax.nn.sigmoid(logits)

    return kernel


# ----------------------------------------------------------------------------
# Parameter packing (plain JAX, outside the kernel)
# ----------------------------------------------------------------------------
# Packed gate order: i, f, o (sigmoid block) followed by g (tanh block).
_GATE_ORDER = (0, 1, 3, 2)   # indices into the reference (i, f, g, o) layout


def _pack_bidir_layer(p_fwd, p_bwd):
    """Pack one bidirectional LSTM layer into the fused-kernel layout."""
    wih_f, whh_f, b_f = p_fwd["wih"], p_fwd["whh"], p_fwd["b"]
    wih_b, whh_b, b_b = p_bwd["wih"], p_bwd["whh"], p_bwd["b"]
    H = whh_f.shape[0]

    wih_cols, b_cols, whh_blocks = [], [], []
    for q in _GATE_ORDER:                    # packed order: i, f, o, g
        sl = slice(q * H, (q + 1) * H)
        wih_cols += [wih_f[:, sl], wih_b[:, sl]]
        b_cols += [b_f[:, sl], b_b[:, sl]]
        blk = jnp.zeros((2 * H, 2 * H), jnp.float32)
        blk = blk.at[0:H, 0:H].set(whh_f[:, sl])
        blk = blk.at[H:2 * H, H:2 * H].set(whh_b[:, sl])
        whh_blocks.append(blk)

    wih_comb = jnp.concatenate(wih_cols, axis=1)     # [D, 8H]
    b_comb = jnp.concatenate(b_cols, axis=1)         # [1, 8H]
    whh_comb = jnp.concatenate(whh_blocks, axis=1)   # [2H, 8H] block-diagonal
    return wih_comb, whh_comb, b_comb


# ----------------------------------------------------------------------------
# CSNET forward (single fused pallas_call)
# ----------------------------------------------------------------------------
def csnet_forward(features, params, num_layers):
    """features: [T, 1, D]  ->  scores: [T, 1]"""
    x = features[:, 0, :].astype(jnp.float32)        # squeeze batch dim (==1)
    T, _ = x.shape
    H = params["lstm"][0]["fwd"]["whh"].shape[0]

    packed = []
    for l in range(num_layers):
        p = params["lstm"][l]
        packed.extend(_pack_bidir_layer(p["fwd"], p["bwd"]))

    # Lane-dense head params / output: real weight, bias and score in lane 0.
    OUT_LANES = 128
    wh_pad = jnp.zeros((2 * H, OUT_LANES), jnp.float32).at[:, 0:1].set(params["out_w"])
    bh_pad = jnp.zeros((1, OUT_LANES), jnp.float32).at[:, 0:1].set(params["out_b"])

    operands = [x, *packed, wh_pad, bh_pad]          # all operands are 2-D
    in_specs = [pl.BlockSpec(op.shape, lambda i: (0, 0)) for op in operands]

    out = pl.pallas_call(
        _make_csnet_kernel(num_layers),
        out_shape=jax.ShapeDtypeStruct((T, OUT_LANES), jnp.float32),
        grid=(1,),
        in_specs=in_specs,
        out_specs=pl.BlockSpec((T, OUT_LANES), lambda i: (0, 0)),
        compiler_params=pltpu.CompilerParams(dimension_semantics=("arbitrary",)),
    )(*operands)
    return out[:, :1]                                # [T, 1]


# ----------------------------------------------------------------------------
# Pure-JAX reference (mirrors torch.nn.LSTM bidirectional semantics, f32)
# ----------------------------------------------------------------------------
def _lstm_dir_ref(x, wih, whh, b):
    H = whh.shape[0]

    def step(carry, x_t):
        h, c = carry
        gates = x_t @ wih + h @ whh + b[0]
        i_g = jax.nn.sigmoid(gates[0:H])
        f_g = jax.nn.sigmoid(gates[H:2 * H])
        g_g = jnp.tanh(gates[2 * H:3 * H])
        o_g = jax.nn.sigmoid(gates[3 * H:4 * H])
        c_new = f_g * c + i_g * g_g
        h_new = o_g * jnp.tanh(c_new)
        return (h_new, c_new), h_new

    h0 = jnp.zeros((H,), jnp.float32)
    c0 = jnp.zeros((H,), jnp.float32)
    _, hs = lax.scan(step, (h0, c0), x)
    return hs


def csnet_forward_ref(features, params, num_layers):
    x = features[:, 0, :].astype(jnp.float32)
    layer_in = x
    for l in range(num_layers):
        p = params["lstm"][l]
        h_fwd = _lstm_dir_ref(layer_in, p["fwd"]["wih"], p["fwd"]["whh"], p["fwd"]["b"])
        h_bwd = jnp.flip(
            _lstm_dir_ref(jnp.flip(layer_in, axis=0),
                          p["bwd"]["wih"], p["bwd"]["whh"], p["bwd"]["b"]),
            axis=0,
        )
        layer_in = jnp.concatenate([h_fwd, h_bwd], axis=-1)
    logits = layer_in @ params["out_w"] + params["out_b"]
    return jax.nn.sigmoid(logits)


# ----------------------------------------------------------------------------
# Deterministic parameter init (PyTorch-style U(-1/sqrt(H), 1/sqrt(H)))
# ----------------------------------------------------------------------------
def init_params(key, input_size, hidden_size, num_layers):
    k = 1.0 / np.sqrt(hidden_size)
    params = {"lstm": []}
    for l in range(num_layers):
        d_in = input_size if l == 0 else 2 * hidden_size
        layer = {}
        for dname in ("fwd", "bwd"):
            key, k1, k2, k3, k4 = jax.random.split(key, 5)
            wih = jax.random.uniform(k1, (d_in, 4 * hidden_size), jnp.float32, -k, k)
            whh = jax.random.uniform(k2, (hidden_size, 4 * hidden_size), jnp.float32, -k, k)
            b_ih = jax.random.uniform(k3, (4 * hidden_size,), jnp.float32, -k, k)
            b_hh = jax.random.uniform(k4, (4 * hidden_size,), jnp.float32, -k, k)
            layer[dname] = {"wih": wih, "whh": whh, "b": (b_ih + b_hh)[None, :]}
        params["lstm"].append(layer)
    key, k1, k2 = jax.random.split(key, 3)
    ko = 1.0 / np.sqrt(2 * hidden_size)
    params["out_w"] = jax.random.uniform(k1, (2 * hidden_size, 1), jnp.float32, -ko, ko)
    params["out_b"] = jax.random.uniform(k2, (1, 1), jnp.float32, -ko, ko)
    return params


# ----------------------------------------------------------------------------
if __name__ == "__main__":
    SEQ_LEN = 8
    INPUT_SIZE = 16
    HIDDEN_SIZE = 32
    NUM_LAYERS = 2

    root = jax.random.PRNGKey(0)
    k_feat, k_param = jax.random.split(root)

    features = jax.random.normal(k_feat, (SEQ_LEN, 1, INPUT_SIZE), jnp.float32)
    params = init_params(k_param, INPUT_SIZE, HIDDEN_SIZE, NUM_LAYERS)

    fwd = jax.jit(functools.partial(csnet_forward, num_layers=NUM_LAYERS))
    scores = fwd(features, params)
    jax.block_until_ready(scores)

    ref = csnet_forward_ref(features, params, NUM_LAYERS)
    # Tolerance loosened vs the f32 reference because the recurrence matmul
    # (h @ W_hh) now runs in bf16 on the MXU; observed error is ~1e-3.
    np.testing.assert_allclose(np.asarray(scores), np.asarray(ref),
                               rtol=2e-2, atol=2e-2)
    assert scores.shape == (SEQ_LEN, 1)

    print("KERNEL_OK")
</pallas_src>

<mosaic_0001>
module attributes {stable_mosaic.version = 11 : i64} {
  func.func @kernel(%arg0: i32, %arg1: memref<8x16xf32, #tpu.memory_space<vmem>>, %arg2: memref<16x256xf32, #tpu.memory_space<vmem>>, %arg3: memref<64x256xf32, #tpu.memory_space<vmem>>, %arg4: memref<1x256xf32, #tpu.memory_space<vmem>>, %arg5: memref<64x256xf32, #tpu.memory_space<vmem>>, %arg6: memref<64x256xf32, #tpu.memory_space<vmem>>, %arg7: memref<1x256xf32, #tpu.memory_space<vmem>>, %arg8: memref<64x128xf32, #tpu.memory_space<vmem>>, %arg9: memref<1x128xf32, #tpu.memory_space<vmem>>, %arg10: memref<8x128xf32, #tpu.memory_space<vmem>>) attributes {dimension_semantics = [#tpu.dimension_semantics<arbitrary>], iteration_bounds = array<i64: 1>, scalar_prefetch = 0 : i64, scratch_operands = 0 : i64, tpu.core_type = #tpu.core_type<tc>, window_params = [{pipeline_mode = #tpu.pipeline_mode<synchronous>, transform_indices = @transform_0, window_bounds = array<i64: 8, 16>}, {pipeline_mode = #tpu.pipeline_mode<synchronous>, transform_indices = @transform_1, window_bounds = array<i64: 16, 256>}, {pipeline_mode = #tpu.pipeline_mode<synchronous>, transform_indices = @transform_2, window_bounds = array<i64: 64, 256>}, {pipeline_mode = #tpu.pipeline_mode<synchronous>, transform_indices = @transform_3, window_bounds = array<i64: 1, 256>}, {pipeline_mode = #tpu.pipeline_mode<synchronous>, transform_indices = @transform_4, window_bounds = array<i64: 64, 256>}, {pipeline_mode = #tpu.pipeline_mode<synchronous>, transform_indices = @transform_5, window_bounds = array<i64: 64, 256>}, {pipeline_mode = #tpu.pipeline_mode<synchronous>, transform_indices = @transform_6, window_bounds = array<i64: 1, 256>}, {pipeline_mode = #tpu.pipeline_mode<synchronous>, transform_indices = @transform_7, window_bounds = array<i64: 64, 128>}, {pipeline_mode = #tpu.pipeline_mode<synchronous>, transform_indices = @transform_8, window_bounds = array<i64: 1, 128>}, {pipeline_mode = #tpu.pipeline_mode<synchronous>, transform_indices = @transform_9, window_bounds = array<i64: 8, 128>}]} {
    %c0 = arith.constant 0 : index
    %c0_0 = arith.constant 0 : index
    %0 = vector.load %arg1[%c0, %c0_0] : memref<8x16xf32, #tpu.memory_space<vmem>>, vector<8x16xf32>
    %c0_1 = arith.constant 0 : index
    %c0_2 = arith.constant 0 : index
    %1 = vector.load %arg2[%c0_1, %c0_2] : memref<16x256xf32, #tpu.memory_space<vmem>>, vector<16x256xf32>
    %cst = arith.constant dense<0.000000e+00> : vector<8x256xf32>
    %2 = tpu.matmul %0, %1, %cst {dimension_numbers = #tpu.dot_dimension_numbers<[1], [0], [0], [1], [0, 0, 1, 1], [], []>} : vector<8x16xf32>, vector<16x256xf32>, vector<8x256xf32> -> vector<8x256xf32>
    %c0_3 = arith.constant 0 : index
    %c0_4 = arith.constant 0 : index
    %3 = vector.load %arg4[%c0_3, %c0_4] : memref<1x256xf32, #tpu.memory_space<vmem>>, vector<1x256xf32>
    %4 = vector.broadcast %3 : vector<1x256xf32> to vector<8x256xf32>
    %5 = arith.addf %2, %4 : vector<8x256xf32>
    %6 = tpu.iota {dimensions = array<i32: 1>} : vector<1x256xi32>
    %c32_i32 = arith.constant 32 : i32
    %7 = vector.broadcast %c32_i32 : i32 to vector<1x256xi32>
    %8 = arith.cmpi slt, %6, %7 : vector<1x256xi32>
    %c64_i32 = arith.constant 64 : i32
    %9 = vector.broadcast %c64_i32 : i32 to vector<1x256xi32>
    %10 = arith.cmpi sge, %6, %9 : vector<1x256xi32>
    %c96_i32 = arith.constant 96 : i32
    %11 = vector.broadcast %c96_i32 : i32 to vector<1x256xi32>
    %12 = arith.cmpi slt, %6, %11 : vector<1x256xi32>
    %13 = arith.andi %10, %12 : vector<1x256xi1>
    %14 = arith.ori %8, %13 : vector<1x256xi1>
    %c128_i32 = arith.constant 128 : i32
    %15 = vector.broadcast %c128_i32 : i32 to vector<1x256xi32>
    %16 = arith.cmpi sge, %6, %15 : vector<1x256xi32>
    %c160_i32 = arith.constant 160 : i32
    %17 = vector.broadcast %c160_i32 : i32 to vector<1x256xi32>
    %18 = arith.cmpi slt, %6, %17 : vector<1x256xi32>
    %19 = arith.andi %16, %18 : vector<1x256xi1>
    %20 = arith.ori %14, %19 : vector<1x256xi1>
    %c192_i32 = arith.constant 192 : i32
    %21 = vector.broadcast %c192_i32 : i32 to vector<1x256xi32>
    %22 = arith.cmpi sge, %6, %21 : vector<1x256xi32>
    %c224_i32 = arith.constant 224 : i32
    %23 = vector.broadcast %c224_i32 : i32 to vector<1x256xi32>
    %24 = arith.cmpi slt, %6, %23 : vector<1x256xi32>
    %25 = arith.andi %22, %24 : vector<1x256xi1>
    %26 = arith.ori %20, %25 : vector<1x256xi1>
    %27 = vector.extract_strided_slice %5 {offsets = [0, 0], sizes = [1, 256], strides = [1, 1]} : vector<8x256xf32> to vector<1x256xf32>
    %28 = vector.extract_strided_slice %5 {offsets = [7, 0], sizes = [1, 256], strides = [1, 1]} : vector<8x256xf32> to vector<1x256xf32>
    %29 = arith.select %26, %27, %28 : vector<1x256xi1>, vector<1x256xf32>
    %30 = vector.extract_strided_slice %5 {offsets = [1, 0], sizes = [1, 256], strides = [1, 1]} : vector<8x256xf32> to vector<1x256xf32>
    %31 = vector.extract_strided_slice %5 {offsets = [6, 0], sizes = [1, 256], strides = [1, 1]} : vector<8x256xf32> to vector<1x256xf32>
    %32 = arith.select %26, %30, %31 : vector<1x256xi1>, vector<1x256xf32>
    %33 = vector.extract_strided_slice %5 {offsets = [2, 0], sizes = [1, 256], strides = [1, 1]} : vector<8x256xf32> to vector<1x256xf32>
    %34 = vector.extract_strided_slice %5 {offsets = [5, 0], sizes = [1, 256], strides = [1, 1]} : vector<8x256xf32> to vector<1x256xf32>
    %35 = arith.select %26, %33, %34 : vector<1x256xi1>, vector<1x256xf32>
    %36 = vector.extract_strided_slice %5 {offsets = [3, 0], sizes = [1, 256], strides = [1, 1]} : vector<8x256xf32> to vector<1x256xf32>
    %37 = vector.extract_strided_slice %5 {offsets = [4, 0], sizes = [1, 256], strides = [1, 1]} : vector<8x256xf32> to vector<1x256xf32>
    %38 = arith.select %26, %36, %37 : vector<1x256xi1>, vector<1x256xf32>
    %39 = vector.extract_strided_slice %5 {offsets = [4, 0], sizes = [1, 256], strides = [1, 1]} : vector<8x256xf32> to vector<1x256xf32>
    %40 = vector.extract_strided_slice %5 {offsets = [3, 0], sizes = [1, 256], strides = [1, 1]} : vector<8x256xf32> to vector<1x256xf32>
    %41 = arith.select %26, %39, %40 : vector<1x256xi1>, vector<1x256xf32>
    %42 = vector.extract_strided_slice %5 {offsets = [5, 0], sizes = [1, 256], strides = [1, 1]} : vector<8x256xf32> to vector<1x256xf32>
    %43 = vector.extract_strided_slice %5 {offsets = [2, 0], sizes = [1, 256], strides = [1, 1]} : vector<8x256xf32> to vector<1x256xf32>
    %44 = arith.select %26, %42, %43 : vector<1x256xi1>, vector<1x256xf32>
    %45 = vector.extract_strided_slice %5 {offsets = [6, 0], sizes = [1, 256], strides = [1, 1]} : vector<8x256xf32> to vector<1x256xf32>
    %46 = vector.extract_strided_slice %5 {offsets = [1, 0], sizes = [1, 256], strides = [1, 1]} : vector<8x256xf32> to vector<1x256xf32>
    %47 = arith.select %26, %45, %46 : vector<1x256xi1>, vector<1x256xf32>
    %48 = vector.extract_strided_slice %5 {offsets = [7, 0], sizes = [1, 256], strides = [1, 1]} : vector<8x256xf32> to vector<1x256xf32>
    %49 = vector.extract_strided_slice %5 {offsets = [0, 0], sizes = [1, 256], strides = [1, 1]} : vector<8x256xf32> to vector<1x256xf32>
    %50 = arith.select %26, %48, %49 : vector<1x256xi1>, vector<1x256xf32>
    %c0_5 = arith.constant 0 : index
    %c0_6 = arith.constant 0 : index
    %51 = vector.load %arg3[%c0_5, %c0_6] : memref<64x256xf32, #tpu.memory_space<vmem>>, vector<64x256xf32>
    %52 = arith.truncf %51 : vector<64x256xf32> to vector<64x256xbf16>
    %cst_7 = arith.constant 0.000000e+00 : f32
    %53 = vector.broadcast %cst_7 : f32 to vector<1x64xf32>
    %cst_8 = arith.constant 0.000000e+00 : f32
    %54 = vector.broadcast %cst_8 : f32 to vector<1x64xf32>
    %55 = arith.truncf %53 : vector<1x64xf32> to vector<1x64xbf16>
    %cst_9 = arith.constant dense<0.000000e+00> : vector<1x256xf32>
    %56 = tpu.matmul %55, %52, %cst_9 {dimension_numbers = #tpu.dot_dimension_numbers<[1], [0], [0], [1], [0, 0, 1, 1], [], []>} : vector<1x64xbf16>, vector<64x256xbf16>, vector<1x256xf32> -> vector<1x256xf32>
    %57 = arith.addf %29, %56 : vector<1x256xf32>
    %58 = arith.negf %57 : vector<1x256xf32>
    %59 = math.exp %58 : vector<1x256xf32>
    %cst_10 = arith.constant 1.000000e+00 : f32
    %60 = vector.broadcast %cst_10 : f32 to vector<1x256xf32>
    %61 = arith.addf %60, %59 : vector<1x256xf32>
    %62 = arith.divf %60, %61 : vector<1x256xf32>
    %63 = vector.extract_strided_slice %57 {offsets = [0, 192], sizes = [1, 64], strides = [1, 1]} : vector<1x256xf32> to vector<1x64xf32>
    %64 = math.tanh %63 : vector<1x64xf32>
    %65 = vector.extract_strided_slice %62 {offsets = [0, 0], sizes = [1, 64], strides = [1, 1]} : vector<1x256xf32> to vector<1x64xf32>
    %66 = vector.extract_strided_slice %62 {offsets = [0, 64], sizes = [1, 64], strides = [1, 1]} : vector<1x256xf32> to vector<1x64xf32>
    %67 = vector.extract_strided_slice %62 {offsets = [0, 128], sizes = [1, 64], strides = [1, 1]} : vector<1x256xf32> to vector<1x64xf32>
    %68 = arith.mulf %66, %54 : vector<1x64xf32>
    %69 = arith.mulf %65, %64 : vector<1x64xf32>
    %70 = arith.addf %68, %69 : vector<1x64xf32>
    %71 = math.tanh %70 : vector<1x64xf32>
    %72 = arith.mulf %67, %71 : vector<1x64xf32>
    %73 = vector.extract_strided_slice %72 {offsets = [0, 0], sizes = [1, 32], strides = [1, 1]} : vector<1x64xf32> to vector<1x32xf32>
    %74 = vector.extract_strided_slice %72 {offsets = [0, 32], sizes = [1, 32], strides = [1, 1]} : vector<1x64xf32> to vector<1x32xf32>
    %75 = arith.truncf %72 : vector<1x64xf32> to vector<1x64xbf16>
    %cst_11 = arith.constant dense<0.000000e+00> : vector<1x256xf32>
    %76 = tpu.matmul %75, %52, %cst_11 {dimension_numbers = #tpu.dot_dimension_numbers<[1], [0], [0], [1], [0, 0, 1, 1], [], []>} : vector<1x64xbf16>, vector<64x256xbf16>, vector<1x256xf32> -> vector<1x256xf32>
    %77 = arith.addf %32, %76 : vector<1x256xf32>
    %78 = arith.negf %77 : vector<1x256xf32>
    %79 = math.exp %78 : vector<1x256xf32>
    %cst_12 = arith.constant 1.000000e+00 : f32
    %80 = vector.broadcast %cst_12 : f32 to vector<1x256xf32>
    %81 = arith.addf %80, %79 : vector<1x256xf32>
    %82 = arith.divf %80, %81 : vector<1x256xf32>
    %83 = vector.extract_strided_slice %77 {offsets = [0, 192], sizes = [1, 64], strides = [1, 1]} : vector<1x256xf32> to vector<1x64xf32>
    %84 = math.tanh %83 : vector<1x64xf32>
    %85 = vector.extract_strided_slice %82 {offsets = [0, 0], sizes = [1, 64], strides = [1, 1]} : vector<1x256xf32> to vector<1x64xf32>
    %86 = vector.extract_strided_slice %82 {offsets = [0, 64], sizes = [1, 64], strides = [1, 1]} : vector<1x256xf32> to vector<1x64xf32>
    %87 = vector.extract_strided_slice %82 {offsets = [0, 128], sizes = [1, 64], strides = [1, 1]} : vector<1x256xf32> to vector<1x64xf32>
    %88 = arith.mulf %86, %70 : vector<1x64xf32>
    %89 = arith.mulf %85, %84 : vector<1x64xf32>
    %90 = arith.addf %88, %89 : vector<1x64xf32>
    %91 = math.tanh %90 : vector<1x64xf32>
    %92 = arith.mulf %87, %91 : vector<1x64xf32>
    %93 = vector.extract_strided_slice %92 {offsets = [0, 0], sizes = [1, 32], strides = [1, 1]} : vector<1x64xf32> to vector<1x32xf32>
    %94 = vector.extract_strided_slice %92 {offsets = [0, 32], sizes = [1, 32], strides = [1, 1]} : vector<1x64xf32> to vector<1x32xf32>
    %95 = arith.truncf %92 : vector<1x64xf32> to vector<1x64xbf16>
    %cst_13 = arith.constant dense<0.000000e+00> : vector<1x256xf32>
    %96 = tpu.matmul %95, %52, %cst_13 {dimension_numbers = #tpu.dot_dimension_numbers<[1], [0], [0], [1], [0, 0, 1, 1], [], []>} : vector<1x64xbf16>, vector<64x256xbf16>, vector<1x256xf32> -> vector<1x256xf32>
    %97 = arith.addf %35, %96 : vector<1x256xf32>
    %98 = arith.negf %97 : vector<1x256xf32>
    %99 = math.exp %98 : vector<1x256xf32>
    %cst_14 = arith.constant 1.000000e+00 : f32
    %100 = vector.broadcast %cst_14 : f32 to vector<1x256xf32>
    %101 = arith.addf %100, %99 : vector<1x256xf32>
    %102 = arith.divf %100, %101 : vector<1x256xf32>
    %103 = vector.extract_strided_slice %97 {offsets = [0, 192], sizes = [1, 64], strides = [1, 1]} : vector<1x256xf32> to vector<1x64xf32>
    %104 = math.tanh %103 : vector<1x64xf32>
    %105 = vector.extract_strided_slice %102 {offsets = [0, 0], sizes = [1, 64], strides = [1, 1]} : vector<1x256xf32> to vector<1x64xf32>
    %106 = vector.extract_strided_slice %102 {offsets = [0, 64], sizes = [1, 64], strides = [1, 1]} : vector<1x256xf32> to vector<1x64xf32>
    %107 = vector.extract_strided_slice %102 {offsets = [0, 128], sizes = [1, 64], strides = [1, 1]} : vector<1x256xf32> to vector<1x64xf32>
    %108 = arith.mulf %106, %90 : vector<1x64xf32>
    %109 = arith.mulf %105, %104 : vector<1x64xf32>
    %110 = arith.addf %108, %109 : vector<1x64xf32>
    %111 = math.tanh %110 : vector<1x64xf32>
    %112 = arith.mulf %107, %111 : vector<1x64xf32>
    %113 = vector.extract_strided_slice %112 {offsets = [0, 0], sizes = [1, 32], strides = [1, 1]} : vector<1x64xf32> to vector<1x32xf32>
    %114 = vector.extract_strided_slice %112 {offsets = [0, 32], sizes = [1, 32], strides = [1, 1]} : vector<1x64xf32> to vector<1x32xf32>
    %115 = arith.truncf %112 : vector<1x64xf32> to vector<1x64xbf16>
    %cst_15 = arith.constant dense<0.000000e+00> : vector<1x256xf32>
    %116 = tpu.matmul %115, %52, %cst_15 {dimension_numbers = #tpu.dot_dimension_numbers<[1], [0], [0], [1], [0, 0, 1, 1], [], []>} : vector<1x64xbf16>, vector<64x256xbf16>, vector<1x256xf32> -> vector<1x256xf32>
    %117 = arith.addf %38, %116 : vector<1x256xf32>
    %118 = arith.negf %117 : vector<1x256xf32>
    %119 = math.exp %118 : vector<1x256xf32>
    %cst_16 = arith.constant 1.000000e+00 : f32
    %120 = vector.broadcast %cst_16 : f32 to vector<1x256xf32>
    %121 = arith.addf %120, %119 : vector<1x256xf32>
    %122 = arith.divf %120, %121 : vector<1x256xf32>
    %123 = vector.extract_strided_slice %117 {offsets = [0, 192], sizes = [1, 64], strides = [1, 1]} : vector<1x256xf32> to vector<1x64xf32>
    %124 = math.tanh %123 : vector<1x64xf32>
    %125 = vector.extract_strided_slice %122 {offsets = [0, 0], sizes = [1, 64], strides = [1, 1]} : vector<1x256xf32> to vector<1x64xf32>
    %126 = vector.extract_strided_slice %122 {offsets = [0, 64], sizes = [1, 64], strides = [1, 1]} : vector<1x256xf32> to vector<1x64xf32>
    %127 = vector.extract_strided_slice %122 {offsets = [0, 128], sizes = [1, 64], strides = [1, 1]} : vector<1x256xf32> to vector<1x64xf32>
    %128 = arith.mulf %126, %110 : vector<1x64xf32>
    %129 = arith.mulf %125, %124 : vector<1x64xf32>
    %130 = arith.addf %128, %129 : vector<1x64xf32>
    %131 = math.tanh %130 : vector<1x64xf32>
    %132 = arith.mulf %127, %131 : vector<1x64xf32>
    %133 = vector.extract_strided_slice %132 {offsets = [0, 0], sizes = [1, 32], strides = [1, 1]} : vector<1x64xf32> to vector<1x32xf32>
    %134 = vector.extract_strided_slice %132 {offsets = [0, 32], sizes = [1, 32], strides = [1, 1]} : vector<1x64xf32> to vector<1x32xf32>
    %135 = arith.truncf %132 : vector<1x64xf32> to vector<1x64xbf16>
    %cst_17 = arith.constant dense<0.000000e+00> : vector<1x256xf32>
    %136 = tpu.matmul %135, %52, %cst_17 {dimension_numbers = #tpu.dot_dimension_numbers<[1], [0], [0], [1], [0, 0, 1, 1], [], []>} : vector<1x64xbf16>, vector<64x256xbf16>, vector<1x256xf32> -> vector<1x256xf32>
    %137 = arith.addf %41, %136 : vector<1x256xf32>
    %138 = arith.negf %137 : vector<1x256xf32>
    %139 = math.exp %138 : vector<1x256xf32>
    %cst_18 = arith.constant 1.000000e+00 : f32
    %140 = vector.broadcast %cst_18 : f32 to vector<1x256xf32>
    %141 = arith.addf %140, %139 : vector<1x256xf32>
    %142 = arith.divf %140, %141 : vector<1x256xf32>
    %143 = vector.extract_strided_slice %137 {offsets = [0, 192], sizes = [1, 64], strides = [1, 1]} : vector<1x256xf32> to vector<1x64xf32>
    %144 = math.tanh %143 : vector<1x64xf32>
    %145 = vector.extract_strided_slice %142 {offsets = [0, 0], sizes = [1, 64], strides = [1, 1]} : vector<1x256xf32> to vector<1x64xf32>
    %146 = vector.extract_strided_slice %142 {offsets = [0, 64], sizes = [1, 64], strides = [1, 1]} : vector<1x256xf32> to vector<1x64xf32>
    %147 = vector.extract_strided_slice %142 {offsets = [0, 128], sizes = [1, 64], strides = [1, 1]} : vector<1x256xf32> to vector<1x64xf32>
    %148 = arith.mulf %146, %130 : vector<1x64xf32>
    %149 = arith.mulf %145, %144 : vector<1x64xf32>
    %150 = arith.addf %148, %149 : vector<1x64xf32>
    %151 = math.tanh %150 : vector<1x64xf32>
    %152 = arith.mulf %147, %151 : vector<1x64xf32>
    %153 = vector.extract_strided_slice %152 {offsets = [0, 0], sizes = [1, 32], strides = [1, 1]} : vector<1x64xf32> to vector<1x32xf32>
    %154 = vector.extract_strided_slice %152 {offsets = [0, 32], sizes = [1, 32], strides = [1, 1]} : vector<1x64xf32> to vector<1x32xf32>
    %155 = arith.truncf %152 : vector<1x64xf32> to vector<1x64xbf16>
    %cst_19 = arith.constant dense<0.000000e+00> : vector<1x256xf32>
    %156 = tpu.matmul %155, %52, %cst_19 {dimension_numbers = #tpu.dot_dimension_numbers<[1], [0], [0], [1], [0, 0, 1, 1], [], []>} : vector<1x64xbf16>, vector<64x256xbf16>, vector<1x256xf32> -> vector<1x256xf32>
    %157 = arith.addf %44, %156 : vector<1x256xf32>
    %158 = arith.negf %157 : vector<1x256xf32>
    %159 = math.exp %158 : vector<1x256xf32>
    %cst_20 = arith.constant 1.000000e+00 : f32
    %160 = vector.broadcast %cst_20 : f32 to vector<1x256xf32>
    %161 = arith.addf %160, %159 : vector<1x256xf32>
    %162 = arith.divf %160, %161 : vector<1x256xf32>
    %163 = vector.extract_strided_slice %157 {offsets = [0, 192], sizes = [1, 64], strides = [1, 1]} : vector<1x256xf32> to vector<1x64xf32>
    %164 = math.tanh %163 : vector<1x64xf32>
    %165 = vector.extract_strided_slice %162 {offsets = [0, 0], sizes = [1, 64], strides = [1, 1]} : vector<1x256xf32> to vector<1x64xf32>
    %166 = vector.extract_strided_slice %162 {offsets = [0, 64], sizes = [1, 64], strides = [1, 1]} : vector<1x256xf32> to vector<1x64xf32>
    %167 = vector.extract_strided_slice %162 {offsets = [0, 128], sizes = [1, 64], strides = [1, 1]} : vector<1x256xf32> to vector<1x64xf32>
    %168 = arith.mulf %166, %150 : vector<1x64xf32>
    %169 = arith.mulf %165, %164 : vector<1x64xf32>
    %170 = arith.addf %168, %169 : vector<1x64xf32>
    %171 = math.tanh %170 : vector<1x64xf32>
    %172 = arith.mulf %167, %171 : vector<1x64xf32>
    %173 = vector.extract_strided_slice %172 {offsets = [0, 0], sizes = [1, 32], strides = [1, 1]} : vector<1x64xf32> to vector<1x32xf32>
    %174 = vector.extract_strided_slice %172 {offsets = [0, 32], sizes = [1, 32], strides = [1, 1]} : vector<1x64xf32> to vector<1x32xf32>
    %175 = arith.truncf %172 : vector<1x64xf32> to vector<1x64xbf16>
    %cst_21 = arith.constant dense<0.000000e+00> : vector<1x256xf32>
    %176 = tpu.matmul %175, %52, %cst_21 {dimension_numbers = #tpu.dot_dimension_numbers<[1], [0], [0], [1], [0, 0, 1, 1], [], []>} : vector<1x64xbf16>, vector<64x256xbf16>, vector<1x256xf32> -> vector<1x256xf32>
    %177 = arith.addf %47, %176 : vector<1x256xf32>
    %178 = arith.negf %177 : vector<1x256xf32>
    %179 = math.exp %178 : vector<1x256xf32>
    %cst_22 = arith.constant 1.000000e+00 : f32
    %180 = vector.broadcast %cst_22 : f32 to vector<1x256xf32>
    %181 = arith.addf %180, %179 : vector<1x256xf32>
    %182 = arith.divf %180, %181 : vector<1x256xf32>
    %183 = vector.extract_strided_slice %177 {offsets = [0, 192], sizes = [1, 64], strides = [1, 1]} : vector<1x256xf32> to vector<1x64xf32>
    %184 = math.tanh %183 : vector<1x64xf32>
    %185 = vector.extract_strided_slice %182 {offsets = [0, 0], sizes = [1, 64], strides = [1, 1]} : vector<1x256xf32> to vector<1x64xf32>
    %186 = vector.extract_strided_slice %182 {offsets = [0, 64], sizes = [1, 64], strides = [1, 1]} : vector<1x256xf32> to vector<1x64xf32>
    %187 = vector.extract_strided_slice %182 {offsets = [0, 128], sizes = [1, 64], strides = [1, 1]} : vector<1x256xf32> to vector<1x64xf32>
    %188 = arith.mulf %186, %170 : vector<1x64xf32>
    %189 = arith.mulf %185, %184 : vector<1x64xf32>
    %190 = arith.addf %188, %189 : vector<1x64xf32>
    %191 = math.tanh %190 : vector<1x64xf32>
    %192 = arith.mulf %187, %191 : vector<1x64xf32>
    %193 = vector.extract_strided_slice %192 {offsets = [0, 0], sizes = [1, 32], strides = [1, 1]} : vector<1x64xf32> to vector<1x32xf32>
    %194 = vector.extract_strided_slice %192 {offsets = [0, 32], sizes = [1, 32], strides = [1, 1]} : vector<1x64xf32> to vector<1x32xf32>
    %195 = arith.truncf %192 : vector<1x64xf32> to vector<1x64xbf16>
    %cst_23 = arith.constant dense<0.000000e+00> : vector<1x256xf32>
    %196 = tpu.matmul %195, %52, %cst_23 {dimension_numbers = #tpu.dot_dimension_numbers<[1], [0], [0], [1], [0, 0, 1, 1], [], []>} : vector<1x64xbf16>, vector<64x256xbf16>, vector<1x256xf32> -> vector<1x256xf32>
    %197 = arith.addf %50, %196 : vector<1x256xf32>
    %198 = arith.negf %197 : vector<1x256xf32>
    %199 = math.exp %198 : vector<1x256xf32>
    %cst_24 = arith.constant 1.000000e+00 : f32
    %200 = vector.broadcast %cst_24 : f32 to vector<1x256xf32>
    %201 = arith.addf %200, %199 : vector<1x256xf32>
    %202 = arith.divf %200, %201 : vector<1x256xf32>
    %203 = vector.extract_strided_slice %197 {offsets = [0, 192], sizes = [1, 64], strides = [1, 1]} : vector<1x256xf32> to vector<1x64xf32>
    %204 = math.tanh %203 : vector<1x64xf32>
    %205 = vector.extract_strided_slice %202 {offsets = [0, 0], sizes = [1, 64], strides = [1, 1]} : vector<1x256xf32> to vector<1x64xf32>
    %206 = vector.extract_strided_slice %202 {offsets = [0, 64], sizes = [1, 64], strides = [1, 1]} : vector<1x256xf32> to vector<1x64xf32>
    %207 = vector.extract_strided_slice %202 {offsets = [0, 128], sizes = [1, 64], strides = [1, 1]} : vector<1x256xf32> to vector<1x64xf32>
    %208 = arith.mulf %206, %190 : vector<1x64xf32>
    %209 = arith.mulf %205, %204 : vector<1x64xf32>
    %210 = arith.addf %208, %209 : vector<1x64xf32>
    %211 = math.tanh %210 : vector<1x64xf32>
    %212 = arith.mulf %207, %211 : vector<1x64xf32>
    %213 = vector.extract_strided_slice %212 {offsets = [0, 0], sizes = [1, 32], strides = [1, 1]} : vector<1x64xf32> to vector<1x32xf32>
    %214 = vector.extract_strided_slice %212 {offsets = [0, 32], sizes = [1, 32], strides = [1, 1]} : vector<1x64xf32> to vector<1x32xf32>
    %215 = tpu.concatenate %73, %93, %113, %133, %153, %173, %193, %213 in 0 : vector<1x32xf32>, vector<1x32xf32>, vector<1x32xf32>, vector<1x32xf32>, vector<1x32xf32>, vector<1x32xf32>, vector<1x32xf32>, vector<1x32xf32> -> vector<8x32xf32>
    %216 = tpu.concatenate %214, %194, %174, %154, %134, %114, %94, %74 in 0 : vector<1x32xf32>, vector<1x32xf32>, vector<1x32xf32>, vector<1x32xf32>, vector<1x32xf32>, vector<1x32xf32>, vector<1x32xf32>, vector<1x32xf32> -> vector<8x32xf32>
    %217 = tpu.concatenate %215, %216 in 1 : vector<8x32xf32>, vector<8x32xf32> -> vector<8x64xf32>
    %c0_25 = arith.constant 0 : index
    %c0_26 = arith.constant 0 : index
    %218 = vector.load %arg5[%c0_25, %c0_26] : memref<64x256xf32, #tpu.memory_space<vmem>>, vector<64x256xf32>
    %cst_27 = arith.constant dense<0.000000e+00> : vector<8x256xf32>
    %219 = tpu.matmul %217, %218, %cst_27 {dimension_numbers = #tpu.dot_dimension_numbers<[1], [0], [0], [1], [0, 0, 1, 1], [], []>} : vector<8x64xf32>, vector<64x256xf32>, vector<8x256xf32> -> vector<8x256xf32>
    %c0_28 = arith.constant 0 : index
    %c0_29 = arith.constant 0 : index
    %220 = vector.load %arg7[%c0_28, %c0_29] : memref<1x256xf32, #tpu.memory_space<vmem>>, vector<1x256xf32>
    %221 = vector.broadcast %220 : vector<1x256xf32> to vector<8x256xf32>
    %222 = arith.addf %219, %221 : vector<8x256xf32>
    %223 = tpu.iota {dimensions = array<i32: 1>} : vector<1x256xi32>
    %c32_i32_30 = arith.constant 32 : i32
    %224 = vector.broadcast %c32_i32_30 : i32 to vector<1x256xi32>
    %225 = arith.cmpi slt, %223, %224 : vector<1x256xi32>
    %c64_i32_31 = arith.constant 64 : i32
    %226 = vector.broadcast %c64_i32_31 : i32 to vector<1x256xi32>
    %227 = arith.cmpi sge, %223, %226 : vector<1x256xi32>
    %c96_i32_32 = arith.constant 96 : i32
    %228 = vector.broadcast %c96_i32_32 : i32 to vector<1x256xi32>
    %229 = arith.cmpi slt, %223, %228 : vector<1x256xi32>
    %230 = arith.andi %227, %229 : vector<1x256xi1>
    %231 = arith.ori %225, %230 : vector<1x256xi1>
    %c128_i32_33 = arith.constant 128 : i32
    %232 = vector.broadcast %c128_i32_33 : i32 to vector<1x256xi32>
    %233 = arith.cmpi sge, %223, %232 : vector<1x256xi32>
    %c160_i32_34 = arith.constant 160 : i32
    %234 = vector.broadcast %c160_i32_34 : i32 to vector<1x256xi32>
    %235 = arith.cmpi slt, %223, %234 : vector<1x256xi32>
    %236 = arith.andi %233, %235 : vector<1x256xi1>
    %237 = arith.ori %231, %236 : vector<1x256xi1>
    %c192_i32_35 = arith.constant 192 : i32
    %238 = vector.broadcast %c192_i32_35 : i32 to vector<1x256xi32>
    %239 = arith.cmpi sge, %223, %238 : vector<1x256xi32>
    %c224_i32_36 = arith.constant 224 : i32
    %240 = vector.broadcast %c224_i32_36 : i32 to vector<1x256xi32>
    %241 = arith.cmpi slt, %223, %240 : vector<1x256xi32>
    %242 = arith.andi %239, %241 : vector<1x256xi1>
    %243 = arith.ori %237, %242 : vector<1x256xi1>
    %244 = vector.extract_strided_slice %222 {offsets = [0, 0], sizes = [1, 256], strides = [1, 1]} : vector<8x256xf32> to vector<1x256xf32>
    %245 = vector.extract_strided_slice %222 {offsets = [7, 0], sizes = [1, 256], strides = [1, 1]} : vector<8x256xf32> to vector<1x256xf32>
    %246 = arith.select %243, %244, %245 : vector<1x256xi1>, vector<1x256xf32>
    %247 = vector.extract_strided_slice %222 {offsets = [1, 0], sizes = [1, 256], strides = [1, 1]} : vector<8x256xf32> to vector<1x256xf32>
    %248 = vector.extract_strided_slice %222 {offsets = [6, 0], sizes = [1, 256], strides = [1, 1]} : vector<8x256xf32> to vector<1x256xf32>
    %249 = arith.select %243, %247, %248 : vector<1x256xi1>, vector<1x256xf32>
    %250 = vector.extract_strided_slice %222 {offsets = [2, 0], sizes = [1, 256], strides = [1, 1]} : vector<8x256xf32> to vector<1x256xf32>
    %251 = vector.extract_strided_slice %222 {offsets = [5, 0], sizes = [1, 256], strides = [1, 1]} : vector<8x256xf32> to vector<1x256xf32>
    %252 = arith.select %243, %250, %251 : vector<1x256xi1>, vector<1x256xf32>
    %253 = vector.extract_strided_slice %222 {offsets = [3, 0], sizes = [1, 256], strides = [1, 1]} : vector<8x256xf32> to vector<1x256xf32>
    %254 = vector.extract_strided_slice %222 {offsets = [4, 0], sizes = [1, 256], strides = [1, 1]} : vector<8x256xf32> to vector<1x256xf32>
    %255 = arith.select %243, %253, %254 : vector<1x256xi1>, vector<1x256xf32>
    %256 = vector.extract_strided_slice %222 {offsets = [4, 0], sizes = [1, 256], strides = [1, 1]} : vector<8x256xf32> to vector<1x256xf32>
    %257 = vector.extract_strided_slice %222 {offsets = [3, 0], sizes = [1, 256], strides = [1, 1]} : vector<8x256xf32> to vector<1x256xf32>
    %258 = arith.select %243, %256, %257 : vector<1x256xi1>, vector<1x256xf32>
    %259 = vector.extract_strided_slice %222 {offsets = [5, 0], sizes = [1, 256], strides = [1, 1]} : vector<8x256xf32> to vector<1x256xf32>
    %260 = vector.extract_strided_slice %222 {offsets = [2, 0], sizes = [1, 256], strides = [1, 1]} : vector<8x256xf32> to vector<1x256xf32>
    %261 = arith.select %243, %259, %260 : vector<1x256xi1>, vector<1x256xf32>
    %262 = vector.extract_strided_slice %222 {offsets = [6, 0], sizes = [1, 256], strides = [1, 1]} : vector<8x256xf32> to vector<1x256xf32>
    %263 = vector.extract_strided_slice %222 {offsets = [1, 0], sizes = [1, 256], strides = [1, 1]} : vector<8x256xf32> to vector<1x256xf32>
    %264 = arith.select %243, %262, %263 : vector<1x256xi1>, vector<1x256xf32>
    %265 = vector.extract_strided_slice %222 {offsets = [7, 0], sizes = [1, 256], strides = [1, 1]} : vector<8x256xf32> to vector<1x256xf32>
    %266 = vector.extract_strided_slice %222 {offsets = [0, 0], sizes = [1, 256], strides = [1, 1]} : vector<8x256xf32> to vector<1x256xf32>
    %267 = arith.select %243, %265, %266 : vector<1x256xi1>, vector<1x256xf32>
    %c0_37 = arith.constant 0 : index
    %c0_38 = arith.constant 0 : index
    %268 = vector.load %arg6[%c0_37, %c0_38] : memref<64x256xf32, #tpu.memory_space<vmem>>, vector<64x256xf32>
    %269 = arith.truncf %268 : vector<64x256xf32> to vector<64x256xbf16>
    %cst_39 = arith.constant 0.000000e+00 : f32
    %270 = vector.broadcast %cst_39 : f32 to vector<1x64xf32>
    %cst_40 = arith.constant 0.000000e+00 : f32
    %271 = vector.broadcast %cst_40 : f32 to vector<1x64xf32>
    %272 = arith.truncf %270 : vector<1x64xf32> to vector<1x64xbf16>
    %cst_41 = arith.constant dense<0.000000e+00> : vector<1x256xf32>
    %273 = tpu.matmul %272, %269, %cst_41 {dimension_numbers = #tpu.dot_dimension_numbers<[1], [0], [0], [1], [0, 0, 1, 1], [], []>} : vector<1x64xbf16>, vector<64x256xbf16>, vector<1x256xf32> -> vector<1x256xf32>
    %274 = arith.addf %246, %273 : vector<1x256xf32>
    %275 = arith.negf %274 : vector<1x256xf32>
    %276 = math.exp %275 : vector<1x256xf32>
    %cst_42 = arith.constant 1.000000e+00 : f32
    %277 = vector.broadcast %cst_42 : f32 to vector<1x256xf32>
    %278 = arith.addf %277, %276 : vector<1x256xf32>
    %279 = arith.divf %277, %278 : vector<1x256xf32>
    %280 = vector.extract_strided_slice %274 {offsets = [0, 192], sizes = [1, 64], strides = [1, 1]} : vector<1x256xf32> to vector<1x64xf32>
    %281 = math.tanh %280 : vector<1x64xf32>
    %282 = vector.extract_strided_slice %279 {offsets = [0, 0], sizes = [1, 64], strides = [1, 1]} : vector<1x256xf32> to vector<1x64xf32>
    %283 = vector.extract_strided_slice %279 {offsets = [0, 64], sizes = [1, 64], strides = [1, 1]} : vector<1x256xf32> to vector<1x64xf32>
    %284 = vector.extract_strided_slice %279 {offsets = [0, 128], sizes = [1, 64], strides = [1, 1]} : vector<1x256xf32> to vector<1x64xf32>
    %285 = arith.mulf %283, %271 : vector<1x64xf32>
    %286 = arith.mulf %282, %281 : vector<1x64xf32>
    %287 = arith.addf %285, %286 : vector<1x64xf32>
    %288 = math.tanh %287 : vector<1x64xf32>
    %289 = arith.mulf %284, %288 : vector<1x64xf32>
    %290 = vector.extract_strided_slice %289 {offsets = [0, 0], sizes = [1, 32], strides = [1, 1]} : vector<1x64xf32> to vector<1x32xf32>
    %291 = vector.extract_strided_slice %289 {offsets = [0, 32], sizes = [1, 32], strides = [1, 1]} : vector<1x64xf32> to vector<1x32xf32>
    %292 = arith.truncf %289 : vector<1x64xf32> to vector<1x64xbf16>
    %cst_43 = arith.constant dense<0.000000e+00> : vector<1x256xf32>
    %293 = tpu.matmul %292, %269, %cst_43 {dimension_numbers = #tpu.dot_dimension_numbers<[1], [0], [0], [1], [0, 0, 1, 1], [], []>} : vector<1x64xbf16>, vector<64x256xbf16>, vector<1x256xf32> -> vector<1x256xf32>
    %294 = arith.addf %249, %293 : vector<1x256xf32>
    %295 = arith.negf %294 : vector<1x256xf32>
    %296 = math.exp %295 : vector<1x256xf32>
    %cst_44 = arith.constant 1.000000e+00 : f32
    %297 = vector.broadcast %cst_44 : f32 to vector<1x256xf32>
    %298 = arith.addf %297, %296 : vector<1x256xf32>
    %299 = arith.divf %297, %298 : vector<1x256xf32>
    %300 = vector.extract_strided_slice %294 {offsets = [0, 192], sizes = [1, 64], strides = [1, 1]} : vector<1x256xf32> to vector<1x64xf32>
    %301 = math.tanh %300 : vector<1x64xf32>
    %302 = vector.extract_strided_slice %299 {offsets = [0, 0], sizes = [1, 64], strides = [1, 1]} : vector<1x256xf32> to vector<1x64xf32>
    %303 = vector.extract_strided_slice %299 {offsets = [0, 64], sizes = [1, 64], strides = [1, 1]} : vector<1x256xf32> to vector<1x64xf32>
    %304 = vector.extract_strided_slice %299 {offsets = [0, 128], sizes = [1, 64], strides = [1, 1]} : vector<1x256xf32> to vector<1x64xf32>
    %305 = arith.mulf %303, %287 : vector<1x64xf32>
    %306 = arith.mulf %302, %301 : vector<1x64xf32>
    %307 = arith.addf %305, %306 : vector<1x64xf32>
    %308 = math.tanh %307 : vector<1x64xf32>
    %309 = arith.mulf %304, %308 : vector<1x64xf32>
    %310 = vector.extract_strided_slice %309 {offsets = [0, 0], sizes = [1, 32], strides = [1, 1]} : vector<1x64xf32> to vector<1x32xf32>
    %311 = vector.extract_strided_slice %309 {offsets = [0, 32], sizes = [1, 32], strides = [1, 1]} : vector<1x64xf32> to vector<1x32xf32>
    %312 = arith.truncf %309 : vector<1x64xf32> to vector<1x64xbf16>
    %cst_45 = arith.constant dense<0.000000e+00> : vector<1x256xf32>
    %313 = tpu.matmul %312, %269, %cst_45 {dimension_numbers = #tpu.dot_dimension_numbers<[1], [0], [0], [1], [0, 0, 1, 1], [], []>} : vector<1x64xbf16>, vector<64x256xbf16>, vector<1x256xf32> -> vector<1x256xf32>
    %314 = arith.addf %252, %313 : vector<1x256xf32>
    %315 = arith.negf %314 : vector<1x256xf32>
    %316 = math.exp %315 : vector<1x256xf32>
    %cst_46 = arith.constant 1.000000e+00 : f32
    %317 = vector.broadcast %cst_46 : f32 to vector<1x256xf32>
    %318 = arith.addf %317, %316 : vector<1x256xf32>
    %319 = arith.divf %317, %318 : vector<1x256xf32>
    %320 = vector.extract_strided_slice %314 {offsets = [0, 192], sizes = [1, 64], strides = [1, 1]} : vector<1x256xf32> to vector<1x64xf32>
    %321 = math.tanh %320 : vector<1x64xf32>
    %322 = vector.extract_strided_slice %319 {offsets = [0, 0], sizes = [1, 64], strides = [1, 1]} : vector<1x256xf32> to vector<1x64xf32>
    %323 = vector.extract_strided_slice %319 {offsets = [0, 64], sizes = [1, 64], strides = [1, 1]} : vector<1x256xf32> to vector<1x64xf32>
    %324 = vector.extract_strided_slice %319 {offsets = [0, 128], sizes = [1, 64], strides = [1, 1]} : vector<1x256xf32> to vector<1x64xf32>
    %325 = arith.mulf %323, %307 : vector<1x64xf32>
    %326 = arith.mulf %322, %321 : vector<1x64xf32>
    %327 = arith.addf %325, %326 : vector<1x64xf32>
    %328 = math.tanh %327 : vector<1x64xf32>
    %329 = arith.mulf %324, %328 : vector<1x64xf32>
    %330 = vector.extract_strided_slice %329 {offsets = [0, 0], sizes = [1, 32], strides = [1, 1]} : vector<1x64xf32> to vector<1x32xf32>
    %331 = vector.extract_strided_slice %329 {offsets = [0, 32], sizes = [1, 32], strides = [1, 1]} : vector<1x64xf32> to vector<1x32xf32>
    %332 = arith.truncf %329 : vector<1x64xf32> to vector<1x64xbf16>
    %cst_47 = arith.constant dense<0.000000e+00> : vector<1x256xf32>
    %333 = tpu.matmul %332, %269, %cst_47 {dimension_numbers = #tpu.dot_dimension_numbers<[1], [0], [0], [1], [0, 0, 1, 1], [], []>} : vector<1x64xbf16>, vector<64x256xbf16>, vector<1x256xf32> -> vector<1x256xf32>
    %334 = arith.addf %255, %333 : vector<1x256xf32>
    %335 = arith.negf %334 : vector<1x256xf32>
    %336 = math.exp %335 : vector<1x256xf32>
    %cst_48 = arith.constant 1.000000e+00 : f32
    %337 = vector.broadcast %cst_48 : f32 to vector<1x256xf32>
    %338 = arith.addf %337, %336 : vector<1x256xf32>
    %339 = arith.divf %337, %338 : vector<1x256xf32>
    %340 = vector.extract_strided_slice %334 {offsets = [0, 192], sizes = [1, 64], strides = [1, 1]} : vector<1x256xf32> to vector<1x64xf32>
    %341 = math.tanh %340 : vector<1x64xf32>
    %342 = vector.extract_strided_slice %339 {offsets = [0, 0], sizes = [1, 64], strides = [1, 1]} : vector<1x256xf32> to vector<1x64xf32>
    %343 = vector.extract_strided_slice %339 {offsets = [0, 64], sizes = [1, 64], strides = [1, 1]} : vector<1x256xf32> to vector<1x64xf32>
    %344 = vector.extract_strided_slice %339 {offsets = [0, 128], sizes = [1, 64], strides = [1, 1]} : vector<1x256xf32> to vector<1x64xf32>
    %345 = arith.mulf %343, %327 : vector<1x64xf32>
    %346 = arith.mulf %342, %341 : vector<1x64xf32>
    %347 = arith.addf %345, %346 : vector<1x64xf32>
    %348 = math.tanh %347 : vector<1x64xf32>
    %349 = arith.mulf %344, %348 : vector<1x64xf32>
    %350 = vector.extract_strided_slice %349 {offsets = [0, 0], sizes = [1, 32], strides = [1, 1]} : vector<1x64xf32> to vector<1x32xf32>
    %351 = vector.extract_strided_slice %349 {offsets = [0, 32], sizes = [1, 32], strides = [1, 1]} : vector<1x64xf32> to vector<1x32xf32>
    %352 = arith.truncf %349 : vector<1x64xf32> to vector<1x64xbf16>
    %cst_49 = arith.constant dense<0.000000e+00> : vector<1x256xf32>
    %353 = tpu.matmul %352, %269, %cst_49 {dimension_numbers = #tpu.dot_dimension_numbers<[1], [0], [0], [1], [0, 0, 1, 1], [], []>} : vector<1x64xbf16>, vector<64x256xbf16>, vector<1x256xf32> -> vector<1x256xf32>
    %354 = arith.addf %258, %353 : vector<1x256xf32>
    %355 = arith.negf %354 : vector<1x256xf32>
    %356 = math.exp %355 : vector<1x256xf32>
    %cst_50 = arith.constant 1.000000e+00 : f32
    %357 = vector.broadcast %cst_50 : f32 to vector<1x256xf32>
    %358 = arith.addf %357, %356 : vector<1x256xf32>
    %359 = arith.divf %357, %358 : vector<1x256xf32>
    %360 = vector.extract_strided_slice %354 {offsets = [0, 192], sizes = [1, 64], strides = [1, 1]} : vector<1x256xf32> to vector<1x64xf32>
    %361 = math.tanh %360 : vector<1x64xf32>
    %362 = vector.extract_strided_slice %359 {offsets = [0, 0], sizes = [1, 64], strides = [1, 1]} : vector<1x256xf32> to vector<1x64xf32>
    %363 = vector.extract_strided_slice %359 {offsets = [0, 64], sizes = [1, 64], strides = [1, 1]} : vector<1x256xf32> to vector<1x64xf32>
    %364 = vector.extract_strided_slice %359 {offsets = [0, 128], sizes = [1, 64], strides = [1, 1]} : vector<1x256xf32> to vector<1x64xf32>
    %365 = arith.mulf %363, %347 : vector<1x64xf32>
    %366 = arith.mulf %362, %361 : vector<1x64xf32>
    %367 = arith.addf %365, %366 : vector<1x64xf32>
    %368 = math.tanh %367 : vector<1x64xf32>
    %369 = arith.mulf %364, %368 : vector<1x64xf32>
    %370 = vector.extract_strided_slice %369 {offsets = [0, 0], sizes = [1, 32], strides = [1, 1]} : vector<1x64xf32> to vector<1x32xf32>
    %371 = vector.extract_strided_slice %369 {offsets = [0, 32], sizes = [1, 32], strides = [1, 1]} : vector<1x64xf32> to vector<1x32xf32>
    %372 = arith.truncf %369 : vector<1x64xf32> to vector<1x64xbf16>
    %cst_51 = arith.constant dense<0.000000e+00> : vector<1x256xf32>
    %373 = tpu.matmul %372, %269, %cst_51 {dimension_numbers = #tpu.dot_dimension_numbers<[1], [0], [0], [1], [0, 0, 1, 1], [], []>} : vector<1x64xbf16>, vector<64x256xbf16>, vector<1x256xf32> -> vector<1x256xf32>
    %374 = arith.addf %261, %373 : vector<1x256xf32>
    %375 = arith.negf %374 : vector<1x256xf32>
    %376 = math.exp %375 : vector<1x256xf32>
    %cst_52 = arith.constant 1.000000e+00 : f32
    %377 = vector.broadcast %cst_52 : f32 to vector<1x256xf32>
    %378 = arith.addf %377, %376 : vector<1x256xf32>
    %379 = arith.divf %377, %378 : vector<1x256xf32>
    %380 = vector.extract_strided_slice %374 {offsets = [0, 192], sizes = [1, 64], strides = [1, 1]} : vector<1x256xf32> to vector<1x64xf32>
    %381 = math.tanh %380 : vector<1x64xf32>
    %382 = vector.extract_strided_slice %379 {offsets = [0, 0], sizes = [1, 64], strides = [1, 1]} : vector<1x256xf32> to vector<1x64xf32>
    %383 = vector.extract_strided_slice %379 {offsets = [0, 64], sizes = [1, 64], strides = [1, 1]} : vector<1x256xf32> to vector<1x64xf32>
    %384 = vector.extract_strided_slice %379 {offsets = [0, 128], sizes = [1, 64], strides = [1, 1]} : vector<1x256xf32> to vector<1x64xf32>
    %385 = arith.mulf %383, %367 : vector<1x64xf32>
    %386 = arith.mulf %382, %381 : vector<1x64xf32>
    %387 = arith.addf %385, %386 : vector<1x64xf32>
    %388 = math.tanh %387 : vector<1x64xf32>
    %389 = arith.mulf %384, %388 : vector<1x64xf32>
    %390 = vector.extract_strided_slice %389 {offsets = [0, 0], sizes = [1, 32], strides = [1, 1]} : vector<1x64xf32> to vector<1x32xf32>
    %391 = vector.extract_strided_slice %389 {offsets = [0, 32], sizes = [1, 32], strides = [1, 1]} : vector<1x64xf32> to vector<1x32xf32>
    %392 = arith.truncf %389 : vector<1x64xf32> to vector<1x64xbf16>
    %cst_53 = arith.constant dense<0.000000e+00> : vector<1x256xf32>
    %393 = tpu.matmul %392, %269, %cst_53 {dimension_numbers = #tpu.dot_dimension_numbers<[1], [0], [0], [1], [0, 0, 1, 1], [], []>} : vector<1x64xbf16>, vector<64x256xbf16>, vector<1x256xf32> -> vector<1x256xf32>
    %394 = arith.addf %264, %393 : vector<1x256xf32>
    %395 = arith.negf %394 : vector<1x256xf32>
    %396 = math.exp %395 : vector<1x256xf32>
    %cst_54 = arith.constant 1.000000e+00 : f32
    %397 = vector.broadcast %cst_54 : f32 to vector<1x256xf32>
    %398 = arith.addf %397, %396 : vector<1x256xf32>
    %399 = arith.divf %397, %398 : vector<1x256xf32>
    %400 = vector.extract_strided_slice %394 {offsets = [0, 192], sizes = [1, 64], strides = [1, 1]} : vector<1x256xf32> to vector<1x64xf32>
    %401 = math.tanh %400 : vector<1x64xf32>
    %402 = vector.extract_strided_slice %399 {offsets = [0, 0], sizes = [1, 64], strides = [1, 1]} : vector<1x256xf32> to vector<1x64xf32>
    %403 = vector.extract_strided_slice %399 {offsets = [0, 64], sizes = [1, 64], strides = [1, 1]} : vector<1x256xf32> to vector<1x64xf32>
    %404 = vector.extract_strided_slice %399 {offsets = [0, 128], sizes = [1, 64], strides = [1, 1]} : vector<1x256xf32> to vector<1x64xf32>
    %405 = arith.mulf %403, %387 : vector<1x64xf32>
    %406 = arith.mulf %402, %401 : vector<1x64xf32>
    %407 = arith.addf %405, %406 : vector<1x64xf32>
    %408 = math.tanh %407 : vector<1x64xf32>
    %409 = arith.mulf %404, %408 : vector<1x64xf32>
    %410 = vector.extract_strided_slice %409 {offsets = [0, 0], sizes = [1, 32], strides = [1, 1]} : vector<1x64xf32> to vector<1x32xf32>
    %411 = vector.extract_strided_slice %409 {offsets = [0, 32], sizes = [1, 32], strides = [1, 1]} : vector<1x64xf32> to vector<1x32xf32>
    %412 = arith.truncf %409 : vector<1x64xf32> to vector<1x64xbf16>
    %cst_55 = arith.constant dense<0.000000e+00> : vector<1x256xf32>
    %413 = tpu.matmul %412, %269, %cst_55 {dimension_numbers = #tpu.dot_dimension_numbers<[1], [0], [0], [1], [0, 0, 1, 1], [], []>} : vector<1x64xbf16>, vector<64x256xbf16>, vector<1x256xf32> -> vector<1x256xf32>
    %414 = arith.addf %267, %413 : vector<1x256xf32>
    %415 = arith.negf %414 : vector<1x256xf32>
    %416 = math.exp %415 : vector<1x256xf32>
    %cst_56 = arith.constant 1.000000e+00 : f32
    %417 = vector.broadcast %cst_56 : f32 to vector<1x256xf32>
    %418 = arith.addf %417, %416 : vector<1x256xf32>
    %419 = arith.divf %417, %418 : vector<1x256xf32>
    %420 = vector.extract_strided_slice %414 {offsets = [0, 192], sizes = [1, 64], strides = [1, 1]} : vector<1x256xf32> to vector<1x64xf32>
    %421 = math.tanh %420 : vector<1x64xf32>
    %422 = vector.extract_strided_slice %419 {offsets = [0, 0], sizes = [1, 64], strides = [1, 1]} : vector<1x256xf32> to vector<1x64xf32>
    %423 = vector.extract_strided_slice %419 {offsets = [0, 64], sizes = [1, 64], strides = [1, 1]} : vector<1x256xf32> to vector<1x64xf32>
    %424 = vector.extract_strided_slice %419 {offsets = [0, 128], sizes = [1, 64], strides = [1, 1]} : vector<1x256xf32> to vector<1x64xf32>
    %425 = arith.mulf %423, %407 : vector<1x64xf32>
    %426 = arith.mulf %422, %421 : vector<1x64xf32>
    %427 = arith.addf %425, %426 : vector<1x64xf32>
    %428 = math.tanh %427 : vector<1x64xf32>
    %429 = arith.mulf %424, %428 : vector<1x64xf32>
    %430 = vector.extract_strided_slice %429 {offsets = [0, 0], sizes = [1, 32], strides = [1, 1]} : vector<1x64xf32> to vector<1x32xf32>
    %431 = vector.extract_strided_slice %429 {offsets = [0, 32], sizes = [1, 32], strides = [1, 1]} : vector<1x64xf32> to vector<1x32xf32>
    %432 = tpu.concatenate %290, %310, %330, %350, %370, %390, %410, %430 in 0 : vector<1x32xf32>, vector<1x32xf32>, vector<1x32xf32>, vector<1x32xf32>, vector<1x32xf32>, vector<1x32xf32>, vector<1x32xf32>, vector<1x32xf32> -> vector<8x32xf32>
    %433 = tpu.concatenate %431, %411, %391, %371, %351, %331, %311, %291 in 0 : vector<1x32xf32>, vector<1x32xf32>, vector<1x32xf32>, vector<1x32xf32>, vector<1x32xf32>, vector<1x32xf32>, vector<1x32xf32>, vector<1x32xf32> -> vector<8x32xf32>
    %434 = tpu.concatenate %432, %433 in 1 : vector<8x32xf32>, vector<8x32xf32> -> vector<8x64xf32>
    %c0_57 = arith.constant 0 : index
    %c0_58 = arith.constant 0 : index
    %435 = vector.load %arg8[%c0_57, %c0_58] : memref<64x128xf32, #tpu.memory_space<vmem>>, vector<64x128xf32>
    %cst_59 = arith.constant dense<0.000000e+00> : vector<8x128xf32>
    %436 = tpu.matmul %434, %435, %cst_59 {dimension_numbers = #tpu.dot_dimension_numbers<[1], [0], [0], [1], [0, 0, 1, 1], [], []>} : vector<8x64xf32>, vector<64x128xf32>, vector<8x128xf32> -> vector<8x128xf32>
    %c0_60 = arith.constant 0 : index
    %c0_61 = arith.constant 0 : index
    %437 = vector.load %arg9[%c0_60, %c0_61] : memref<1x128xf32, #tpu.memory_space<vmem>>, vector<1x128xf32>
    %438 = vector.broadcast %437 : vector<1x128xf32> to vector<8x128xf32>
    %439 = arith.addf %436, %438 : vector<8x128xf32>
    %440 = arith.negf %439 : vector<8x128xf32>
    %441 = math.exp %440 : vector<8x128xf32>
    %cst_62 = arith.constant 1.000000e+00 : f32
    %442 = vector.broadcast %cst_62 : f32 to vector<8x128xf32>
    %443 = arith.addf %442, %441 : vector<8x128xf32>
    %444 = arith.divf %442, %443 : vector<8x128xf32>
    %c0_63 = arith.constant 0 : index
    %c0_64 = arith.constant 0 : index
    %445 = vector.load %arg10[%c0_63, %c0_64] : memref<8x128xf32, #tpu.memory_space<vmem>>, vector<8x128xf32>
    tpu.vector_store %arg10[%c0_63, %c0_64], %444 {strides = array<i32>} : memref<8x128xf32, #tpu.memory_space<vmem>>, vector<8x128xf32>,
    return
  }
  func.func @transform_0(%arg0: i32) -> (i32, i32) {
    %c0_i32 = arith.constant 0 : i32
    %c0_i32_0 = arith.constant 0 : i32
    %c0_i32_1 = arith.constant 0 : i32
    return %c0_i32, %c0_i32_0 : i32, i32
  }
  func.func @transform_1(%arg0: i32) -> (i32, i32) {
    %c0_i32 = arith.constant 0 : i32
    %c0_i32_0 = arith.constant 0 : i32
    %c0_i32_1 = arith.constant 0 : i32
    return %c0_i32, %c0_i32_0 : i32, i32
  }
  func.func @transform_2(%arg0: i32) -> (i32, i32) {
    %c0_i32 = arith.constant 0 : i32
    %c0_i32_0 = arith.constant 0 : i32
    %c0_i32_1 = arith.constant 0 : i32
    return %c0_i32, %c0_i32_0 : i32, i32
  }
  func.func @transform_3(%arg0: i32) -> (i32, i32) {
    %c0_i32 = arith.constant 0 : i32
    %c0_i32_0 = arith.constant 0 : i32
    %c0_i32_1 = arith.constant 0 : i32
    return %c0_i32, %c0_i32_0 : i32, i32
  }
  func.func @transform_4(%arg0: i32) -> (i32, i32) {
    %c0_i32 = arith.constant 0 : i32
    %c0_i32_0 = arith.constant 0 : i32
    %c0_i32_1 = arith.constant 0 : i32
    return %c0_i32, %c0_i32_0 : i32, i32
  }
  func.func @transform_5(%arg0: i32) -> (i32, i32) {
    %c0_i32 = arith.constant 0 : i32
    %c0_i32_0 = arith.constant 0 : i32
    %c0_i32_1 = arith.constant 0 : i32
    return %c0_i32, %c0_i32_0 : i32, i32
  }
  func.func @transform_6(%arg0: i32) -> (i32, i32) {
    %c0_i32 = arith.constant 0 : i32
    %c0_i32_0 = arith.constant 0 : i32
    %c0_i32_1 = arith.constant 0 : i32
    return %c0_i32, %c0_i32_0 : i32, i32
  }
  func.func @transform_7(%arg0: i32) -> (i32, i32) {
    %c0_i32 = arith.constant 0 : i32
    %c0_i32_0 = arith.constant 0 : i32
    %c0_i32_1 = arith.constant 0 : i32
    return %c0_i32, %c0_i32_0 : i32, i32
  }
  func.func @transform_8(%arg0: i32) -> (i32, i32) {
    %c0_i32 = arith.constant 0 : i32
    %c0_i32_0 = arith.constant 0 : i32
    %c0_i32_1 = arith.constant 0 : i32
    return %c0_i32, %c0_i32_0 : i32, i32
  }
  func.func @transform_9(%arg0: i32) -> (i32, i32) {
    %c0_i32 = arith.constant 0 : i32
    %c0_i32_0 = arith.constant 0 : i32
    %c0_i32_1 = arith.constant 0 : i32
    return %c0_i32, %c0_i32_0 : i32, i32
  }
}

</mosaic_0001>

<llo_original>
// kernel: csnet_forward.1
$region0: #{csnet_forward.1}
  #allocation0 [shape = 'u32[]', space=smem, size = 0x4, offset = 0x4, fixed_abs, tag = 'smem constant byte address 0x4 - core index']
  #allocation1 [shape = 'u32[72,128]{1,0:T(1,128)}', space=vmem, size = 0x9000, scoped, tag = 'internal scratch']
  %s0 = inlined_call_operand.vmem [shape: f32[8,16], index: 0, kind: input, shape index: {}]
  %s1 = inlined_call_operand.vmem [shape: f32[16,256], index: 1, kind: input, shape index: {}]
  %s2 = inlined_call_operand.vmem [shape: f32[64,256], index: 2, kind: input, shape index: {}]
  %s3 = inlined_call_operand.vmem [shape: f32[1,256], index: 3, kind: input, shape index: {}]
  %s4 = inlined_call_operand.vmem [shape: f32[64,256], index: 4, kind: input, shape index: {}]
  %s5 = inlined_call_operand.vmem [shape: f32[64,256], index: 5, kind: input, shape index: {}]
  %s6 = inlined_call_operand.vmem [shape: f32[1,256], index: 6, kind: input, shape index: {}]
  %s7 = inlined_call_operand.vmem [shape: f32[64,128], index: 7, kind: input, shape index: {}]
  %s8 = inlined_call_operand.vmem [shape: f32[1,128], index: 8, kind: input, shape index: {}]
  %s9 = inlined_call_operand.vmem [shape: f32[8,128], index: 9, kind: output, shape index: {}]
  %s10 = sld [smem:[#allocation0]]
  $region46: #{csnet_forward.1} parent=0
    _
  %s12 = ssub.s32 1, %s10
  %s13 = scalar_select 0, %s12, %s10
  // Predicated region
  $region2: #{csnet_forward.1} parent=0 // pred_check
    _
  $region3: #{csnet_forward.1} parent=0 // pred_check_branch
    %15 = sbr.rel (0) target = $region5
  $region4: #{csnet_forward.1} parent=0 // pred_region
    _
  $region5: #{csnet_forward.1} parent=0 // pred_fallthru
    _
  // Predicated region
  $region6: #{csnet_forward.1} parent=0 // pred_check
    _
  $region7: #{csnet_forward.1} parent=0 // pred_check_branch
    %17 = sbr.rel (0) target = $region9
  $region8: #{csnet_forward.1} parent=0 // pred_region
    _
  $region9: #{csnet_forward.1} parent=0 // pred_fallthru
    _
  // Predicated region
  $region10: #{csnet_forward.1} parent=0 // pred_check
    _
  $region11: #{csnet_forward.1} parent=0 // pred_check_branch
    %19 = sbr.rel (0) target = $region13
  $region12: #{csnet_forward.1} parent=0 // pred_region
    _
  $region13: #{csnet_forward.1} parent=0 // pred_fallthru
    _
  // Predicated region
  $region14: #{csnet_forward.1} parent=0 // pred_check
    _
  $region15: #{csnet_forward.1} parent=0 // pred_check_branch
    %21 = sbr.rel (0) target = $region17
  $region16: #{csnet_forward.1} parent=0 // pred_region
    _
  $region17: #{csnet_forward.1} parent=0 // pred_fallthru
    _
  // Predicated region
  $region18: #{csnet_forward.1} parent=0 // pred_check
    _
  $region19: #{csnet_forward.1} parent=0 // pred_check_branch
    %23 = sbr.rel (0) target = $region21
  $region20: #{csnet_forward.1} parent=0 // pred_region
    _
  $region21: #{csnet_forward.1} parent=0 // pred_fallthru
    _
  // Predicated region
  $region22: #{csnet_forward.1} parent=0 // pred_check
    _
  $region23: #{csnet_forward.1} parent=0 // pred_check_branch
    %25 = sbr.rel (0) target = $region25
  $region24: #{csnet_forward.1} parent=0 // pred_region
    _
  $region25: #{csnet_forward.1} parent=0 // pred_fallthru
    _
  // Predicated region
  $region26: #{csnet_forward.1} parent=0 // pred_check
    _
  $region27: #{csnet_forward.1} parent=0 // pred_check_branch
    %27 = sbr.rel (0) target = $region29
  $region28: #{csnet_forward.1} parent=0 // pred_region
    _
  $region29: #{csnet_forward.1} parent=0 // pred_fallthru
    _
  // Predicated region
  $region30: #{csnet_forward.1} parent=0 // pred_check
    _
  $region31: #{csnet_forward.1} parent=0 // pred_check_branch
    %29 = sbr.rel (0) target = $region33
  $region32: #{csnet_forward.1} parent=0 // pred_region
    _
  $region33: #{csnet_forward.1} parent=0 // pred_fallthru
    _
  // Predicated region
  $region34: #{csnet_forward.1} parent=0 // pred_check
    _
  $region35: #{csnet_forward.1} parent=0 // pred_check_branch
    %31 = sbr.rel (0) target = $region37
  $region36: #{csnet_forward.1} parent=0 // pred_region
    _
  $region37: #{csnet_forward.1} parent=0 // pred_fallthru
    _
  %v33 = vld [vmem:[%s0] sm:$0xff]
  %v34 = vld [vmem:[%s1] sm:$0xff]
  %v35 = vld [vmem:[%s1 + $0x8] sm:$0xff]
  %v36 = vld [vmem:[%s1 + $0x10] sm:$0xff]
  %v37 = vld [vmem:[%s1 + $0x18] sm:$0xff]
  %v38 = vld [vmem:[%s3] sm:$0x3]
  %v40 = vperm.slane %v38, 0
  %v41 = vperm.slane %v38, 1
  %vm44 = vcmask 130048
  %v46 = vsel %vm44, %v33, 0
  %48 = vmatpush.msra.mxu0 0.0
  %49 = vmatpush.msra.mxu0 0.0
  %50 = vmatpush.msra.mxu0 0.0
  %51 = vmatpush.msra.mxu0 0.0
  %52 = vmatpush.msra.mxu0 0.0
  %53 = vmatpush.msra.mxu0 0.0
  %54 = vmatpush.msra.mxu0 0.0
  %55 = vmatpush.msra.mxu0 0.0
  %56 = vmatpush.msra.mxu0 0.0
  %57 = vmatpush.msra.mxu0 0.0
  %58 = vmatpush.msra.mxu0 0.0
  %59 = vmatpush.msra.mxu0 0.0
  %60 = vmatpush.msra.mxu0 0.0
  %61 = vmatpush.msra.mxu0 0.0
  %62 = vmatpush.msra.mxu0 %v36
  %63 = vmatpush.msra.mxu0 %v34
  %64 = vmatmul.f32.gmra.mxu0 %v46
  %v65 = vpop.f32.mrf.mxu0
  %v66 = vadd.f32 %v40, %v65
  %67 = vdwg.mxu0
  %68 = vmatpush.msra.mxu0 0.0
  %69 = vmatpush.msra.mxu0 0.0
  %70 = vmatpush.msra.mxu0 0.0
  %71 = vmatpush.msra.mxu0 0.0
  %72 = vmatpush.msra.mxu0 0.0
  %73 = vmatpush.msra.mxu0 0.0
  %74 = vmatpush.msra.mxu0 0.0
  %75 = vmatpush.msra.mxu0 0.0
  %76 = vmatpush.msra.mxu0 0.0
  %77 = vmatpush.msra.mxu0 0.0
  %78 = vmatpush.msra.mxu0 0.0
  %79 = vmatpush.msra.mxu0 0.0
  %80 = vmatpush.msra.mxu0 0.0
  %81 = vmatpush.msra.mxu0 0.0
  %82 = vmatpush.msra.mxu0 %v37
  %83 = vmatpush.msra.mxu0 %v35
  %84 = vmatmul.f32.gmra.mxu0 %v46
  %v85 = vpop.f32.mrf.mxu0
  %v86 = vadd.f32 %v41, %v85
  %87 = vdwg.mxu0
  %v88 = vlaneseq
  %v89 = vand.u32 %v88, 127
  %v90 = vadd.s32 %v89, 128
  %vm91 = vcmp.lt.s32.totalorder %v89, 32
  %vm92 = vcmp.lt.s32.totalorder %v90, 32
  %vm93 = vcmp.ge.s32.totalorder %v89, 64
  %vm94 = vcmp.ge.s32.totalorder %v90, 64
  %vm95 = vcmp.lt.s32.totalorder %v89, 96
  %vm96 = vcmp.lt.s32.totalorder %v90, 96
  %vm97 = vmand %vm93, %vm95
  %vm98 = vmand %vm94, %vm96
  %vm99 = vmor %vm91, %vm97
  %vm100 = vmor %vm92, %vm98
  %vm101 = vcmp.ge.s32.totalorder %v89, 128
  %vm102 = vcmp.ge.s32.totalorder %v90, 128
  %vm103 = vcmp.lt.s32.totalorder %v89, 160
  %vm104 = vcmp.lt.s32.totalorder %v90, 160
  %vm105 = vmand %vm101, %vm103
  %vm106 = vmand %vm102, %vm104
  %vm107 = vmor %vm99, %vm105
  %vm108 = vmor %vm100, %vm106
  %vm109 = vcmp.ge.s32.totalorder %v89, 192
  %vm110 = vcmp.ge.s32.totalorder %v90, 192
  %vm111 = vcmp.lt.s32.totalorder %v89, 224
  %vm112 = vcmp.lt.s32.totalorder %v90, 224
  %vm113 = vmand %vm109, %vm111
  %vm114 = vmand %vm110, %vm112
  %vm115 = vmor %vm107, %vm113
  %vm116 = vmor %vm108, %vm114
  %v119 = vrot.slane %v66, 7
  %v120 = vrot.slane %v86, 7
  %v123 = vsel %vm115, %v66, %v119
  %v124 = vsel %vm116, %v86, %v120
  %v125 = vrot.slane %v66, 5
  %v126 = vrot.slane %v86, 5
  %v129 = vsel %vm115, %v66, %v125
  %v130 = vsel %vm116, %v86, %v126
  %v131 = vrot.slane %v66, 3
  %v132 = vrot.slane %v86, 3
  %v135 = vsel %vm115, %v66, %v131
  %v136 = vsel %vm116, %v86, %v132
  %v137 = vrot.slane %v66, 1
  %v138 = vrot.slane %v86, 1
  %v141 = vsel %vm115, %v66, %v137
  %v142 = vsel %vm116, %v86, %v138
  %v143 = vld [vmem:[%s2] sm:$0xff]
  %v144 = vld [vmem:[%s2 + $0x8] sm:$0xff]
  %v145 = vld [vmem:[%s2 + $0x10] sm:$0xff]
  %v146 = vld [vmem:[%s2 + $0x18] sm:$0xff]
  %v147 = vld [vmem:[%s2 + $0x20] sm:$0xff]
  %v148 = vld [vmem:[%s2 + $0x28] sm:$0xff]
  %v149 = vld [vmem:[%s2 + $0x30] sm:$0xff]
  %v150 = vld [vmem:[%s2 + $0x38] sm:$0xff]
  %v151 = vld [vmem:[%s2 + $0x40] sm:$0xff]
  %v152 = vld [vmem:[%s2 + $0x48] sm:$0xff]
  %v153 = vld [vmem:[%s2 + $0x50] sm:$0xff]
  %v154 = vld [vmem:[%s2 + $0x58] sm:$0xff]
  %v155 = vld [vmem:[%s2 + $0x60] sm:$0xff]
  %v156 = vld [vmem:[%s2 + $0x68] sm:$0xff]
  %v157 = vld [vmem:[%s2 + $0x70] sm:$0xff]
  %v158 = vld [vmem:[%s2 + $0x78] sm:$0xff]
  %v159 = vpack.c.bf16 %v145, %v143
  %v160 = vpack.c.bf16 %v146, %v144
  %v161 = vpack.c.bf16 %v149, %v147
  %v162 = vpack.c.bf16 %v150, %v148
  %v163 = vpack.c.bf16 %v153, %v151
  %v164 = vpack.c.bf16 %v154, %v152
  %v165 = vpack.c.bf16 %v157, %v155
  %v166 = vpack.c.bf16 %v158, %v156
  %vm167 = vcmask 523264
  %v169 = vsel %vm167, 0, 0
  %171 = vmatpush.bf16.msra.mxu0 0
  %172 = vmatpush.bf16.msra.mxu0 0
  %173 = vmatpush.bf16.msra.mxu0 0
  %174 = vmatpush.bf16.msra.mxu0 0
  %175 = vmatpush.bf16.msra.mxu0 %v165
  %176 = vmatpush.bf16.msra.mxu0 %v163
  %177 = vmatpush.bf16.msra.mxu0 %v161
  %178 = vmatpush.bf16.msra.mxu0 %v159
  %179 = vmatmul.bf16.gmra.mxu0 %v169
  %v180 = vpop.f32.mrf.mxu0
  %v181 = vadd.f32 0.0, %v180
  %v182 = vpop.f32.mrf.mxu0
  %183 = vdwg.mxu0
  %184 = vmatpush.bf16.msra.mxu0 0
  %185 = vmatpush.bf16.msra.mxu0 0
  %186 = vmatpush.bf16.msra.mxu0 0
  %187 = vmatpush.bf16.msra.mxu0 0
  %188 = vmatpush.bf16.msra.mxu0 %v166
  %189 = vmatpush.bf16.msra.mxu0 %v164
  %190 = vmatpush.bf16.msra.mxu0 %v162
  %191 = vmatpush.bf16.msra.mxu0 %v160
  %192 = vmatmul.bf16.gmra.mxu0 %v169
  %v193 = vpop.f32.mrf.mxu0
  %v194 = vadd.f32 0.0, %v193
  %v195 = vpop.f32.mrf.mxu0
  %196 = vdwg.mxu0
  %v197 = vadd.f32 %v123, %v181
  %v198 = vadd.f32 %v124, %v194
  %v199 = vxor.u32 %v197, 2147483648
  %v200 = vxor.u32 %v198, 2147483648
  %v201 = vmul.f32 %v199, 1.442695
  %v202 = vpow.pop %v201
  %v203 = vmul.f32 %v200, 1.442695
  %v204 = vpow.pop %v203
  %v205 = vadd.f32 %v202, 1.0
  %v206 = vadd.f32 %v204, 1.0
  %v207 = vrcp.pop %v205
  %v208 = vmul.f32 %v205, %v207
  %v209 = vsub.f32 1.0, %v208
  %v210 = vmul.f32 %v207, %v209
  %v211 = vadd.f32 %v207, %v210
  %vm212 = vweird.f32 %v205
  %vm213 = vweird.f32 %v207
  %vm214 = vmor %vm212, %vm213
  %v215 = vsel %vm214, %v207, %v211
  %v216 = vand.u32 2147483647, %v205
  %vm217 = vcmp.eq.f32.partialorder %v216, 8.507059e+37
  %v218 = vand.u32 %v205, 2147483648
  %v219 = vor.u32 1.1754944e-38, %v218
  %v220 = vsel %vm217, %v219, %v215
  %v221 = vmul.f32 1.0, %v220
  %v222 = vrcp.pop %v206
  %v223 = vmul.f32 %v206, %v222
  %v224 = vsub.f32 1.0, %v223
  %v225 = vmul.f32 %v222, %v224
  %v226 = vadd.f32 %v222, %v225
  %vm227 = vweird.f32 %v206
  %vm228 = vweird.f32 %v222
  %vm229 = vmor %vm227, %vm228
  %v230 = vsel %vm229, %v222, %v226
  %v231 = vand.u32 2147483647, %v206
  %vm232 = vcmp.eq.f32.partialorder %v231, 8.507059e+37
  %v233 = vand.u32 %v206, 2147483648
  %v234 = vor.u32 1.1754944e-38, %v233
  %v235 = vsel %vm232, %v234, %v230
  %v236 = vmul.f32 1.0, %v235
  %v237 = vtanh.pop %v198
  %v238 = vmul.f32 %v221, 0.0
  %240 = vrot.lane.b32.xlu0 %v237, 64
  %v241 = vpop.permute.xlu0 %240
  %v243 = vmul.f32 %v221, %v241
  %245 = vrot.lane.b32.xlu0 %v243, 64
  %v246 = vpop.permute.xlu0 %245
  %v248 = vadd.f32 %v238, %v246
  %v249 = vtanh.pop %v248
  %251 = vrot.lane.b32.xlu0 %v249, 64
  %v252 = vpop.permute.xlu0 %251
  %v254 = vmul.f32 %v236, %v252
  %v255 = vpack.c.bf16 %v254, %v254
  %v257 = vsel %vm167, %v255, 0
  %259 = vmatpush.bf16.msra.mxu0 0
  %260 = vmatpush.bf16.msra.mxu0 0
  %261 = vmatpush.bf16.msra.mxu0 0
  %262 = vmatpush.bf16.msra.mxu0 0
  %263 = vmatpush.bf16.msra.mxu0 %v165
  %264 = vmatpush.bf16.msra.mxu0 %v163
  %265 = vmatpush.bf16.msra.mxu0 %v161
  %266 = vmatpush.bf16.msra.mxu0 %v159
  %267 = vmatmul.bf16.gmra.mxu0 %v257
  %v268 = vpop.f32.mrf.mxu0
  %v269 = vadd.f32 0.0, %v268
  %v270 = vpop.f32.mrf.mxu0
  %271 = vdwg.mxu0
  %272 = vmatpush.bf16.msra.mxu0 0
  %273 = vmatpush.bf16.msra.mxu0 0
  %274 = vmatpush.bf16.msra.mxu0 0
  %275 = vmatpush.bf16.msra.mxu0 0
  %276 = vmatpush.bf16.msra.mxu0 %v166
  %277 = vmatpush.bf16.msra.mxu0 %v164
  %278 = vmatpush.bf16.msra.mxu0 %v162
  %279 = vmatpush.bf16.msra.mxu0 %v160
  %280 = vmatmul.bf16.gmra.mxu0 %v257
  %v281 = vpop.f32.mrf.mxu0
  %v282 = vadd.f32 0.0, %v281
  %v283 = vpop.f32.mrf.mxu0
  %284 = vdwg.mxu0
  %v287 = vrot.slane %v269, 7
  %v288 = vrot.slane %v282, 7
  %v291 = vadd.f32 %v129, %v287
  %v292 = vadd.f32 %v130, %v288
  %v293 = vxor.u32 %v291, 2147483648
  %v294 = vxor.u32 %v292, 2147483648
  %v295 = vmul.f32 %v293, 1.442695
  %v296 = vpow.pop %v295
  %v297 = vmul.f32 %v294, 1.442695
  %v298 = vpow.pop %v297
  %v299 = vadd.f32 %v296, 1.0
  %v300 = vadd.f32 %v298, 1.0
  %v301 = vrcp.pop %v299
  %v302 = vmul.f32 %v299, %v301
  %v303 = vsub.f32 1.0, %v302
  %v304 = vmul.f32 %v301, %v303
  %v305 = vadd.f32 %v301, %v304
  %vm306 = vweird.f32 %v299
  %vm307 = vweird.f32 %v301
  %vm308 = vmor %vm306, %vm307
  %v309 = vsel %vm308, %v301, %v305
  %v310 = vand.u32 2147483647, %v299
  %vm311 = vcmp.eq.f32.partialorder %v310, 8.507059e+37
  %v312 = vand.u32 %v299, 2147483648
  %v313 = vor.u32 1.1754944e-38, %v312
  %v314 = vsel %vm311, %v313, %v309
  %v315 = vmul.f32 1.0, %v314
  %v316 = vrcp.pop %v300
  %v317 = vmul.f32 %v300, %v316
  %v318 = vsub.f32 1.0, %v317
  %v319 = vmul.f32 %v316, %v318
  %v320 = vadd.f32 %v316, %v319
  %vm321 = vweird.f32 %v300
  %vm322 = vweird.f32 %v316
  %vm323 = vmor %vm321, %vm322
  %v324 = vsel %vm323, %v316, %v320
  %v325 = vand.u32 2147483647, %v300
  %vm326 = vcmp.eq.f32.partialorder %v325, 8.507059e+37
  %v327 = vand.u32 %v300, 2147483648
  %v328 = vor.u32 1.1754944e-38, %v327
  %v329 = vsel %vm326, %v328, %v324
  %v330 = vmul.f32 1.0, %v329
  %v331 = vtanh.pop %v292
  %v333 = vrot.slane %v248, 7
  %v335 = vmul.f32 %v315, %v333
  %337 = vrot.lane.b32.xlu0 %v331, 64
  %v338 = vpop.permute.xlu0 %337
  %v340 = vmul.f32 %v315, %v338
  %342 = vrot.lane.b32.xlu0 %v340, 64
  %v343 = vpop.permute.xlu0 %342
  %v345 = vadd.f32 %v335, %v343
  %v346 = vtanh.pop %v345
  %348 = vrot.lane.b32.xlu0 %v346, 64
  %v349 = vpop.permute.xlu0 %348
  %v351 = vmul.f32 %v330, %v349
  %v352 = vpack.c.bf16 %v351, %v351
  %v354 = vshrl.u32 %v352, 16
  %v357 = vsel %vm167, %v354, 0
  %359 = vmatpush.bf16.msra.mxu0 0
  %360 = vmatpush.bf16.msra.mxu0 0
  %361 = vmatpush.bf16.msra.mxu0 0
  %362 = vmatpush.bf16.msra.mxu0 0
  %363 = vmatpush.bf16.msra.mxu0 %v165
  %364 = vmatpush.bf16.msra.mxu0 %v163
  %365 = vmatpush.bf16.msra.mxu0 %v161
  %366 = vmatpush.bf16.msra.mxu0 %v159
  %367 = vmatmul.bf16.gmra.mxu0 %v357
  %v368 = vpop.f32.mrf.mxu0
  %v369 = vadd.f32 0.0, %v368
  %v370 = vpop.f32.mrf.mxu0
  %371 = vdwg.mxu0
  %372 = vmatpush.bf16.msra.mxu0 0
  %373 = vmatpush.bf16.msra.mxu0 0
  %374 = vmatpush.bf16.msra.mxu0 0
  %375 = vmatpush.bf16.msra.mxu0 0
  %376 = vmatpush.bf16.msra.mxu0 %v166
  %377 = vmatpush.bf16.msra.mxu0 %v164
  %378 = vmatpush.bf16.msra.mxu0 %v162
  %379 = vmatpush.bf16.msra.mxu0 %v160
  %380 = vmatmul.bf16.gmra.mxu0 %v357
  %v381 = vpop.f32.mrf.mxu0
  %v382 = vadd.f32 0.0, %v381
  %v383 = vpop.f32.mrf.mxu0
  %384 = vdwg.mxu0
  %v387 = vrot.slane %v369, 6
  %v388 = vrot.slane %v382, 6
  %v391 = vadd.f32 %v135, %v387
  %v392 = vadd.f32 %v136, %v388
  %v393 = vxor.u32 %v391, 2147483648
  %v394 = vxor.u32 %v392, 2147483648
  %v395 = vmul.f32 %v393, 1.442695
  %v396 = vpow.pop %v395
  %v397 = vmul.f32 %v394, 1.442695
  %v398 = vpow.pop %v397
  %v399 = vadd.f32 %v396, 1.0
  %v400 = vadd.f32 %v398, 1.0
  %v401 = vrcp.pop %v399
  %v402 = vmul.f32 %v399, %v401
  %v403 = vsub.f32 1.0, %v402
  %v404 = vmul.f32 %v401, %v403
  %v405 = vadd.f32 %v401, %v404
  %vm406 = vweird.f32 %v399
  %vm407 = vweird.f32 %v401
  %vm408 = vmor %vm406, %vm407
  %v409 = vsel %vm408, %v401, %v405
  %v410 = vand.u32 2147483647, %v399
  %vm411 = vcmp.eq.f32.partialorder %v410, 8.507059e+37
  %v412 = vand.u32 %v399, 2147483648
  %v413 = vor.u32 1.1754944e-38, %v412
  %v414 = vsel %vm411, %v413, %v409
  %v415 = vmul.f32 1.0, %v414
  %v416 = vrcp.pop %v400
  %v417 = vmul.f32 %v400, %v416
  %v418 = vsub.f32 1.0, %v417
  %v419 = vmul.f32 %v416, %v418
  %v420 = vadd.f32 %v416, %v419
  %vm421 = vweird.f32 %v400
  %vm422 = vweird.f32 %v416
  %vm423 = vmor %vm421, %vm422
  %v424 = vsel %vm423, %v416, %v420
  %v425 = vand.u32 2147483647, %v400
  %vm426 = vcmp.eq.f32.partialorder %v425, 8.507059e+37
  %v427 = vand.u32 %v400, 2147483648
  %v428 = vor.u32 1.1754944e-38, %v427
  %v429 = vsel %vm426, %v428, %v424
  %v430 = vmul.f32 1.0, %v429
  %v431 = vtanh.pop %v392
  %v433 = vrot.slane %v345, 7
  %v435 = vmul.f32 %v415, %v433
  %437 = vrot.lane.b32.xlu0 %v431, 64
  %v438 = vpop.permute.xlu0 %437
  %v440 = vmul.f32 %v415, %v438
  %442 = vrot.lane.b32.xlu0 %v440, 64
  %v443 = vpop.permute.xlu0 %442
  %v445 = vadd.f32 %v435, %v443
  %v446 = vtanh.pop %v445
  %448 = vrot.lane.b32.xlu0 %v446, 64
  %v449 = vpop.permute.xlu0 %448
  %v451 = vmul.f32 %v430, %v449
  %v452 = vpack.c.bf16 %v451, %v451
  %v454 = vrot.slane %v452, 1
  %v456 = vsel %vm167, %v454, 0
  %458 = vmatpush.bf16.msra.mxu0 0
  %459 = vmatpush.bf16.msra.mxu0 0
  %460 = vmatpush.bf16.msra.mxu0 0
  %461 = vmatpush.bf16.msra.mxu0 0
  %462 = vmatpush.bf16.msra.mxu0 %v165
  %463 = vmatpush.bf16.msra.mxu0 %v163
  %464 = vmatpush.bf16.msra.mxu0 %v161
  %465 = vmatpush.bf16.msra.mxu0 %v159
  %466 = vmatmul.bf16.gmra.mxu0 %v456
  %v467 = vpop.f32.mrf.mxu0
  %v468 = vadd.f32 0.0, %v467
  %v469 = vpop.f32.mrf.mxu0
  %470 = vdwg.mxu0
  %471 = vmatpush.bf16.msra.mxu0 0
  %472 = vmatpush.bf16.msra.mxu0 0
  %473 = vmatpush.bf16.msra.mxu0 0
  %474 = vmatpush.bf16.msra.mxu0 0
  %475 = vmatpush.bf16.msra.mxu0 %v166
  %476 = vmatpush.bf16.msra.mxu0 %v164
  %477 = vmatpush.bf16.msra.mxu0 %v162
  %478 = vmatpush.bf16.msra.mxu0 %v160
  %479 = vmatmul.bf16.gmra.mxu0 %v456
  %v480 = vpop.f32.mrf.mxu0
  %v481 = vadd.f32 0.0, %v480
  %v482 = vpop.f32.mrf.mxu0
  %483 = vdwg.mxu0
  %v486 = vrot.slane %v468, 5
  %v487 = vrot.slane %v481, 5
  %v490 = vadd.f32 %v141, %v486
  %v491 = vadd.f32 %v142, %v487
  %v492 = vxor.u32 %v490, 2147483648
  %v493 = vxor.u32 %v491, 2147483648
  %v494 = vmul.f32 %v492, 1.442695
  %v495 = vpow.pop %v494
  %v496 = vmul.f32 %v493, 1.442695
  %v497 = vpow.pop %v496
  %v498 = vadd.f32 %v495, 1.0
  %v499 = vadd.f32 %v497, 1.0
  %v500 = vrcp.pop %v498
  %v501 = vmul.f32 %v498, %v500
  %v502 = vsub.f32 1.0, %v501
  %v503 = vmul.f32 %v500, %v502
  %v504 = vadd.f32 %v500, %v503
  %vm505 = vweird.f32 %v498
  %vm506 = vweird.f32 %v500
  %vm507 = vmor %vm505, %vm506
  %v508 = vsel %vm507, %v500, %v504
  %v509 = vand.u32 2147483647, %v498
  %vm510 = vcmp.eq.f32.partialorder %v509, 8.507059e+37
  %v511 = vand.u32 %v498, 2147483648
  %v512 = vor.u32 1.1754944e-38, %v511
  %v513 = vsel %vm510, %v512, %v508
  %v514 = vmul.f32 1.0, %v513
  %v515 = vrcp.pop %v499
  %v516 = vmul.f32 %v499, %v515
  %v517 = vsub.f32 1.0, %v516
  %v518 = vmul.f32 %v515, %v517
  %v519 = vadd.f32 %v515, %v518
  %vm520 = vweird.f32 %v499
  %vm521 = vweird.f32 %v515
  %vm522 = vmor %vm520, %vm521
  %v523 = vsel %vm522, %v515, %v519
  %v524 = vand.u32 2147483647, %v499
  %vm525 = vcmp.eq.f32.partialorder %v524, 8.507059e+37
  %v526 = vand.u32 %v499, 2147483648
  %v527 = vor.u32 1.1754944e-38, %v526
  %v528 = vsel %vm525, %v527, %v523
  %v529 = vmul.f32 1.0, %v528
  %v530 = vtanh.pop %v491
  %v532 = vrot.slane %v445, 7
  %v534 = vmul.f32 %v514, %v532
  %536 = vrot.lane.b32.xlu0 %v530, 64
  %v537 = vpop.permute.xlu0 %536
  %v539 = vmul.f32 %v514, %v537
  %541 = vrot.lane.b32.xlu0 %v539, 64
  %v542 = vpop.permute.xlu0 %541
  %v544 = vadd.f32 %v534, %v542
  %v545 = vtanh.pop %v544
  %547 = vrot.lane.b32.xlu0 %v545, 64
  %v548 = vpop.permute.xlu0 %547
  %v550 = vmul.f32 %v529, %v548
  %v551 = vpack.c.bf16 %v550, %v550
  %v553 = vshrl.u32 %v551, 16
  %v555 = vrot.slane %v553, 1
  %v557 = vsel %vm167, %v555, 0
  %559 = vmatpush.bf16.msra.mxu0 0
  %560 = vmatpush.bf16.msra.mxu0 0
  %561 = vmatpush.bf16.msra.mxu0 0
  %562 = vmatpush.bf16.msra.mxu0 0
  %563 = vmatpush.bf16.msra.mxu0 %v165
  %564 = vmatpush.bf16.msra.mxu0 %v163
  %565 = vmatpush.bf16.msra.mxu0 %v161
  %566 = vmatpush.bf16.msra.mxu0 %v159
  %567 = vmatmul.bf16.gmra.mxu0 %v557
  %v568 = vpop.f32.mrf.mxu0
  %v569 = vadd.f32 0.0, %v568
  %v570 = vpop.f32.mrf.mxu0
  %571 = vdwg.mxu0
  %572 = vmatpush.bf16.msra.mxu0 0
  %573 = vmatpush.bf16.msra.mxu0 0
  %574 = vmatpush.bf16.msra.mxu0 0
  %575 = vmatpush.bf16.msra.mxu0 0
  %576 = vmatpush.bf16.msra.mxu0 %v166
  %577 = vmatpush.bf16.msra.mxu0 %v164
  %578 = vmatpush.bf16.msra.mxu0 %v162
  %579 = vmatpush.bf16.msra.mxu0 %v160
  %580 = vmatmul.bf16.gmra.mxu0 %v557
  %v581 = vpop.f32.mrf.mxu0
  %v582 = vadd.f32 0.0, %v581
  %v583 = vpop.f32.mrf.mxu0
  %584 = vdwg.mxu0
  %v587 = vrot.slane %v569, 4
  %v588 = vrot.slane %v582, 4
  %v591 = vadd.f32 %v123, %v587
  %v592 = vadd.f32 %v124, %v588
  %v593 = vxor.u32 %v591, 2147483648
  %v594 = vxor.u32 %v592, 2147483648
  %v595 = vmul.f32 %v593, 1.442695
  %v596 = vpow.pop %v595
  %v597 = vmul.f32 %v594, 1.442695
  %v598 = vpow.pop %v597
  %v599 = vadd.f32 %v596, 1.0
  %v600 = vadd.f32 %v598, 1.0
  %v601 = vrcp.pop %v599
  %v602 = vmul.f32 %v599, %v601
  %v603 = vsub.f32 1.0, %v602
  %v604 = vmul.f32 %v601, %v603
  %v605 = vadd.f32 %v601, %v604
  %vm606 = vweird.f32 %v599
  %vm607 = vweird.f32 %v601
  %vm608 = vmor %vm606, %vm607
  %v609 = vsel %vm608, %v601, %v605
  %v610 = vand.u32 2147483647, %v599
  %vm611 = vcmp.eq.f32.partialorder %v610, 8.507059e+37
  %v612 = vand.u32 %v599, 2147483648
  %v613 = vor.u32 1.1754944e-38, %v612
  %v614 = vsel %vm611, %v613, %v609
  %v615 = vmul.f32 1.0, %v614
  %v616 = vrcp.pop %v600
  %v617 = vmul.f32 %v600, %v616
  %v618 = vsub.f32 1.0, %v617
  %v619 = vmul.f32 %v616, %v618
  %v620 = vadd.f32 %v616, %v619
  %vm621 = vweird.f32 %v600
  %vm622 = vweird.f32 %v616
  %vm623 = vmor %vm621, %vm622
  %v624 = vsel %vm623, %v616, %v620
  %v625 = vand.u32 2147483647, %v600
  %vm626 = vcmp.eq.f32.partialorder %v625, 8.507059e+37
  %v627 = vand.u32 %v600, 2147483648
  %v628 = vor.u32 1.1754944e-38, %v627
  %v629 = vsel %vm626, %v628, %v624
  %v630 = vmul.f32 1.0, %v629
  %v631 = vtanh.pop %v592
  %v633 = vrot.slane %v544, 7
  %v635 = vmul.f32 %v615, %v633
  %637 = vrot.lane.b32.xlu0 %v631, 64
  %v638 = vpop.permute.xlu0 %637
  %v640 = vmul.f32 %v615, %v638
  %642 = vrot.lane.b32.xlu0 %v640, 64
  %v643 = vpop.permute.xlu0 %642
  %v645 = vadd.f32 %v635, %v643
  %v646 = vtanh.pop %v645
  %648 = vrot.lane.b32.xlu0 %v646, 64
  %v649 = vpop.permute.xlu0 %648
  %v651 = vmul.f32 %v630, %v649
  %v652 = vpack.c.bf16 %v651, %v651
  %v654 = vrot.slane %v652, 2
  %v656 = vsel %vm167, %v654, 0
  %658 = vmatpush.bf16.msra.mxu0 0
  %659 = vmatpush.bf16.msra.mxu0 0
  %660 = vmatpush.bf16.msra.mxu0 0
  %661 = vmatpush.bf16.msra.mxu0 0
  %662 = vmatpush.bf16.msra.mxu0 %v165
  %663 = vmatpush.bf16.msra.mxu0 %v163
  %664 = vmatpush.bf16.msra.mxu0 %v161
  %665 = vmatpush.bf16.msra.mxu0 %v159
  %666 = vmatmul.bf16.gmra.mxu0 %v656
  %v667 = vpop.f32.mrf.mxu0
  %v668 = vadd.f32 0.0, %v667
  %v669 = vpop.f32.mrf.mxu0
  %670 = vdwg.mxu0
  %671 = vmatpush.bf16.msra.mxu0 0
  %672 = vmatpush.bf16.msra.mxu0 0
  %673 = vmatpush.bf16.msra.mxu0 0
  %674 = vmatpush.bf16.msra.mxu0 0
  %675 = vmatpush.bf16.msra.mxu0 %v166
  %676 = vmatpush.bf16.msra.mxu0 %v164
  %677 = vmatpush.bf16.msra.mxu0 %v162
  %678 = vmatpush.bf16.msra.mxu0 %v160
  %679 = vmatmul.bf16.gmra.mxu0 %v656
  %v680 = vpop.f32.mrf.mxu0
  %v681 = vadd.f32 0.0, %v680
  %v682 = vpop.f32.mrf.mxu0
  %683 = vdwg.mxu0
  %v686 = vrot.slane %v668, 3
  %v687 = vrot.slane %v681, 3
  %v690 = vadd.f32 %v129, %v686
  %v691 = vadd.f32 %v130, %v687
  %v692 = vxor.u32 %v690, 2147483648
  %v693 = vxor.u32 %v691, 2147483648
  %v694 = vmul.f32 %v692, 1.442695
  %v695 = vpow.pop %v694
  %v696 = vmul.f32 %v693, 1.442695
  %v697 = vpow.pop %v696
  %v698 = vadd.f32 %v695, 1.0
  %v699 = vadd.f32 %v697, 1.0
  %v700 = vrcp.pop %v698
  %v701 = vmul.f32 %v698, %v700
  %v702 = vsub.f32 1.0, %v701
  %v703 = vmul.f32 %v700, %v702
  %v704 = vadd.f32 %v700, %v703
  %vm705 = vweird.f32 %v698
  %vm706 = vweird.f32 %v700
  %vm707 = vmor %vm705, %vm706
  %v708 = vsel %vm707, %v700, %v704
  %v709 = vand.u32 2147483647, %v698
  %vm710 = vcmp.eq.f32.partialorder %v709, 8.507059e+37
  %v711 = vand.u32 %v698, 2147483648
  %v712 = vor.u32 1.1754944e-38, %v711
  %v713 = vsel %vm710, %v712, %v708
  %v714 = vmul.f32 1.0, %v713
  %v715 = vrcp.pop %v699
  %v716 = vmul.f32 %v699, %v715
  %v717 = vsub.f32 1.0, %v716
  %v718 = vmul.f32 %v715, %v717
  %v719 = vadd.f32 %v715, %v718
  %vm720 = vweird.f32 %v699
  %vm721 = vweird.f32 %v715
  %vm722 = vmor %vm720, %vm721
  %v723 = vsel %vm722, %v715, %v719
  %v724 = vand.u32 2147483647, %v699
  %vm725 = vcmp.eq.f32.partialorder %v724, 8.507059e+37
  %v726 = vand.u32 %v699, 2147483648
  %v727 = vor.u32 1.1754944e-38, %v726
  %v728 = vsel %vm725, %v727, %v723
  %v729 = vmul.f32 1.0, %v728
  %v730 = vtanh.pop %v691
  %v732 = vrot.slane %v645, 7
  %v734 = vmul.f32 %v714, %v732
  %736 = vrot.lane.b32.xlu0 %v730, 64
  %v737 = vpop.permute.xlu0 %736
  %v739 = vmul.f32 %v714, %v737
  %741 = vrot.lane.b32.xlu0 %v739, 64
  %v742 = vpop.permute.xlu0 %741
  %v744 = vadd.f32 %v734, %v742
  %v745 = vtanh.pop %v744
  %747 = vrot.lane.b32.xlu0 %v745, 64
  %v748 = vpop.permute.xlu0 %747
  %v750 = vmul.f32 %v729, %v748
  %v751 = vpack.c.bf16 %v750, %v750
  %v753 = vshrl.u32 %v751, 16
  %v755 = vrot.slane %v753, 2
  %v757 = vsel %vm167, %v755, 0
  %759 = vmatpush.bf16.msra.mxu0 0
  %760 = vmatpush.bf16.msra.mxu0 0
  %761 = vmatpush.bf16.msra.mxu0 0
  %762 = vmatpush.bf16.msra.mxu0 0
  %763 = vmatpush.bf16.msra.mxu0 %v165
  %764 = vmatpush.bf16.msra.mxu0 %v163
  %765 = vmatpush.bf16.msra.mxu0 %v161
  %766 = vmatpush.bf16.msra.mxu0 %v159
  %767 = vmatmul.bf16.gmra.mxu0 %v757
  %v768 = vpop.f32.mrf.mxu0
  %v769 = vadd.f32 0.0, %v768
  %v770 = vpop.f32.mrf.mxu0
  %771 = vdwg.mxu0
  %772 = vmatpush.bf16.msra.mxu0 0
  %773 = vmatpush.bf16.msra.mxu0 0
  %774 = vmatpush.bf16.msra.mxu0 0
  %775 = vmatpush.bf16.msra.mxu0 0
  %776 = vmatpush.bf16.msra.mxu0 %v166
  %777 = vmatpush.bf16.msra.mxu0 %v164
  %778 = vmatpush.bf16.msra.mxu0 %v162
  %779 = vmatpush.bf16.msra.mxu0 %v160
  %780 = vmatmul.bf16.gmra.mxu0 %v757
  %v781 = vpop.f32.mrf.mxu0
  %v782 = vadd.f32 0.0, %v781
  %v783 = vpop.f32.mrf.mxu0
  %784 = vdwg.mxu0
  %v787 = vrot.slane %v769, 2
  %v788 = vrot.slane %v782, 2
  %v791 = vadd.f32 %v135, %v787
  %v792 = vadd.f32 %v136, %v788
  %v793 = vxor.u32 %v791, 2147483648
  %v794 = vxor.u32 %v792, 2147483648
  %v795 = vmul.f32 %v793, 1.442695
  %v796 = vpow.pop %v795
  %v797 = vmul.f32 %v794, 1.442695
  %v798 = vpow.pop %v797
  %v799 = vadd.f32 %v796, 1.0
  %v800 = vadd.f32 %v798, 1.0
  %v801 = vrcp.pop %v799
  %v802 = vmul.f32 %v799, %v801
  %v803 = vsub.f32 1.0, %v802
  %v804 = vmul.f32 %v801, %v803
  %v805 = vadd.f32 %v801, %v804
  %vm806 = vweird.f32 %v799
  %vm807 = vweird.f32 %v801
  %vm808 = vmor %vm806, %vm807
  %v809 = vsel %vm808, %v801, %v805
  %v810 = vand.u32 2147483647, %v799
  %vm811 = vcmp.eq.f32.partialorder %v810, 8.507059e+37
  %v812 = vand.u32 %v799, 2147483648
  %v813 = vor.u32 1.1754944e-38, %v812
  %v814 = vsel %vm811, %v813, %v809
  %v815 = vmul.f32 1.0, %v814
  %v816 = vrcp.pop %v800
  %v817 = vmul.f32 %v800, %v816
  %v818 = vsub.f32 1.0, %v817
  %v819 = vmul.f32 %v816, %v818
  %v820 = vadd.f32 %v816, %v819
  %vm821 = vweird.f32 %v800
  %vm822 = vweird.f32 %v816
  %vm823 = vmor %vm821, %vm822
  %v824 = vsel %vm823, %v816, %v820
  %v825 = vand.u32 2147483647, %v800
  %vm826 = vcmp.eq.f32.partialorder %v825, 8.507059e+37
  %v827 = vand.u32 %v800, 2147483648
  %v828 = vor.u32 1.1754944e-38, %v827
  %v829 = vsel %vm826, %v828, %v824
  %v830 = vmul.f32 1.0, %v829
  %v831 = vtanh.pop %v792
  %v833 = vrot.slane %v744, 7
  %v835 = vmul.f32 %v815, %v833
  %837 = vrot.lane.b32.xlu0 %v831, 64
  %v838 = vpop.permute.xlu0 %837
  %v840 = vmul.f32 %v815, %v838
  %842 = vrot.lane.b32.xlu0 %v840, 64
  %v843 = vpop.permute.xlu0 %842
  %v845 = vadd.f32 %v835, %v843
  %v846 = vtanh.pop %v845
  %848 = vrot.lane.b32.xlu0 %v846, 64
  %v849 = vpop.permute.xlu0 %848
  %v851 = vmul.f32 %v830, %v849
  %v852 = vpack.c.bf16 %v851, %v851
  %v854 = vrot.slane %v852, 3
  %v856 = vsel %vm167, %v854, 0
  %858 = vmatpush.bf16.msra.mxu0 0
  %859 = vmatpush.bf16.msra.mxu0 0
  %860 = vmatpush.bf16.msra.mxu0 0
  %861 = vmatpush.bf16.msra.mxu0 0
  %862 = vmatpush.bf16.msra.mxu0 %v165
  %863 = vmatpush.bf16.msra.mxu0 %v163
  %864 = vmatpush.bf16.msra.mxu0 %v161
  %865 = vmatpush.bf16.msra.mxu0 %v159
  %866 = vmatmul.bf16.gmra.mxu0 %v856
  %v867 = vpop.f32.mrf.mxu0
  %v868 = vadd.f32 0.0, %v867
  %v869 = vpop.f32.mrf.mxu0
  %870 = vdwg.mxu0
  %871 = vmatpush.bf16.msra.mxu0 0
  %872 = vmatpush.bf16.msra.mxu0 0
  %873 = vmatpush.bf16.msra.mxu0 0
  %874 = vmatpush.bf16.msra.mxu0 0
  %875 = vmatpush.bf16.msra.mxu0 %v166
  %876 = vmatpush.bf16.msra.mxu0 %v164
  %877 = vmatpush.bf16.msra.mxu0 %v162
  %878 = vmatpush.bf16.msra.mxu0 %v160
  %879 = vmatmul.bf16.gmra.mxu0 %v856
  %v880 = vpop.f32.mrf.mxu0
  %v881 = vadd.f32 0.0, %v880
  %v882 = vpop.f32.mrf.mxu0
  %883 = vdwg.mxu0
  %v886 = vrot.slane %v868, 1
  %v887 = vrot.slane %v881, 1
  %v890 = vadd.f32 %v141, %v886
  %v891 = vadd.f32 %v142, %v887
  %v892 = vxor.u32 %v890, 2147483648
  %v893 = vxor.u32 %v891, 2147483648
  %v894 = vmul.f32 %v892, 1.442695
  %v895 = vpow.pop %v894
  %v896 = vmul.f32 %v893, 1.442695
  %v897 = vpow.pop %v896
  %v898 = vadd.f32 %v895, 1.0
  %v899 = vadd.f32 %v897, 1.0
  %v900 = vrcp.pop %v898
  %v901 = vmul.f32 %v898, %v900
  %v902 = vsub.f32 1.0, %v901
  %v903 = vmul.f32 %v900, %v902
  %v904 = vadd.f32 %v900, %v903
  %vm905 = vweird.f32 %v898
  %vm906 = vweird.f32 %v900
  %vm907 = vmor %vm905, %vm906
  %v908 = vsel %vm907, %v900, %v904
  %v909 = vand.u32 2147483647, %v898
  %vm910 = vcmp.eq.f32.partialorder %v909, 8.507059e+37
  %v911 = vand.u32 %v898, 2147483648
  %v912 = vor.u32 1.1754944e-38, %v911
  %v913 = vsel %vm910, %v912, %v908
  %v914 = vmul.f32 1.0, %v913
  %v915 = vrcp.pop %v899
  %v916 = vmul.f32 %v899, %v915
  %v917 = vsub.f32 1.0, %v916
  %v918 = vmul.f32 %v915, %v917
  %v919 = vadd.f32 %v915, %v918
  %vm920 = vweird.f32 %v899
  %vm921 = vweird.f32 %v915
  %vm922 = vmor %vm920, %vm921
  %v923 = vsel %vm922, %v915, %v919
  %v924 = vand.u32 2147483647, %v899
  %vm925 = vcmp.eq.f32.partialorder %v924, 8.507059e+37
  %v926 = vand.u32 %v899, 2147483648
  %v927 = vor.u32 1.1754944e-38, %v926
  %v928 = vsel %vm925, %v927, %v923
  %v929 = vmul.f32 1.0, %v928
  %v930 = vtanh.pop %v891
  %v932 = vrot.slane %v845, 7
  %v934 = vmul.f32 %v914, %v932
  %936 = vrot.lane.b32.xlu0 %v930, 64
  %v937 = vpop.permute.xlu0 %936
  %v939 = vmul.f32 %v914, %v937
  %941 = vrot.lane.b32.xlu0 %v939, 64
  %v942 = vpop.permute.xlu0 %941
  %v944 = vadd.f32 %v934, %v942
  %v945 = vtanh.pop %v944
  %947 = vrot.lane.b32.xlu0 %v945, 64
  %v948 = vpop.permute.xlu0 %947
  %v950 = vmul.f32 %v929, %v948
  %vm951 = vcmask 1040384
  %v952 = vsel %vm951, %v254, %v351
  %vm953 = vcmask 1041408
  %v954 = vsel %vm953, %v952, %v451
  %vm955 = vcmask 1042432
  %v956 = vsel %vm955, %v954, %v550
  %vm957 = vcmask 1043456
  %v958 = vsel %vm957, %v956, %v651
  %vm959 = vcmask 1044480
  %v960 = vsel %vm959, %v958, %v750
  %vm961 = vcmask 1045504
  %v962 = vsel %vm961, %v960, %v851
  %vm963 = vcmask 1046528
  %v964 = vsel %vm963, %v962, %v950
  %v966 = vrot.slane %v950, 7
  %v969 = vrot.slane %v851, 5
  %v972 = vrot.slane %v750, 3
  %v975 = vrot.slane %v651, 1
  %v978 = vrot.slane %v550, 7
  %v981 = vrot.slane %v451, 5
  %v984 = vrot.slane %v351, 3
  %v987 = vrot.slane %v254, 1
  %v989 = vsel %vm951, %v966, %v969
  %v990 = vsel %vm953, %v989, %v972
  %v991 = vsel %vm955, %v990, %v975
  %v992 = vsel %vm957, %v991, %v978
  %v993 = vsel %vm959, %v992, %v981
  %v994 = vsel %vm961, %v993, %v984
  %v995 = vsel %vm963, %v994, %v987
  %vm996 = vcmask 261120
  %v997 = vsel %vm996, %v964, %v995
  %v998 = vld [vmem:[%s4] sm:$0xff]
  %v999 = vld [vmem:[%s4 + $0x8] sm:$0xff]
  %v1000 = vld [vmem:[%s4 + $0x10] sm:$0xff]
  %v1001 = vld [vmem:[%s4 + $0x18] sm:$0xff]
  %v1002 = vld [vmem:[%s4 + $0x20] sm:$0xff]
  %v1003 = vld [vmem:[%s4 + $0x28] sm:$0xff]
  %v1004 = vld [vmem:[%s4 + $0x30] sm:$0xff]
  %v1005 = vld [vmem:[%s4 + $0x38] sm:$0xff]
  %v1006 = vld [vmem:[%s4 + $0x40] sm:$0xff]
  %v1007 = vld [vmem:[%s4 + $0x48] sm:$0xff]
  %v1008 = vld [vmem:[%s4 + $0x50] sm:$0xff]
  %v1009 = vld [vmem:[%s4 + $0x58] sm:$0xff]
  %v1010 = vld [vmem:[%s4 + $0x60] sm:$0xff]
  %v1011 = vld [vmem:[%s4 + $0x68] sm:$0xff]
  %v1012 = vld [vmem:[%s4 + $0x70] sm:$0xff]
  %v1013 = vld [vmem:[%s4 + $0x78] sm:$0xff]
  %v1014 = vld [vmem:[%s6] sm:$0x3]
  %v1016 = vperm.slane %v1014, 0
  %v1017 = vperm.slane %v1014, 1
  %v1021 = vsel %vm167, %v997, 0
  %1023 = vmatpush.msra.mxu0 0.0
  %1024 = vmatpush.msra.mxu0 0.0
  %1025 = vmatpush.msra.mxu0 0.0
  %1026 = vmatpush.msra.mxu0 0.0
  %1027 = vmatpush.msra.mxu0 0.0
  %1028 = vmatpush.msra.mxu0 0.0
  %1029 = vmatpush.msra.mxu0 0.0
  %1030 = vmatpush.msra.mxu0 0.0
  %1031 = vmatpush.msra.mxu0 %v1012
  %1032 = vmatpush.msra.mxu0 %v1010
  %1033 = vmatpush.msra.mxu0 %v1008
  %1034 = vmatpush.msra.mxu0 %v1006
  %1035 = vmatpush.msra.mxu0 %v1004
  %1036 = vmatpush.msra.mxu0 %v1002
  %1037 = vmatpush.msra.mxu0 %v1000
  %1038 = vmatpush.msra.mxu0 %v998
  %1039 = vmatmul.f32.gmra.mxu0 %v1021
  %v1040 = vpop.f32.mrf.mxu0
  %v1041 = vadd.f32 %v1016, %v1040
  %1042 = vdwg.mxu0
  %1043 = vmatpush.msra.mxu0 0.0
  %1044 = vmatpush.msra.mxu0 0.0
  %1045 = vmatpush.msra.mxu0 0.0
  %1046 = vmatpush.msra.mxu0 0.0
  %1047 = vmatpush.msra.mxu0 0.0
  %1048 = vmatpush.msra.mxu0 0.0
  %1049 = vmatpush.msra.mxu0 0.0
  %1050 = vmatpush.msra.mxu0 0.0
  %1051 = vmatpush.msra.mxu0 %v1013
  %1052 = vmatpush.msra.mxu0 %v1011
  %1053 = vmatpush.msra.mxu0 %v1009
  %1054 = vmatpush.msra.mxu0 %v1007
  %1055 = vmatpush.msra.mxu0 %v1005
  %1056 = vmatpush.msra.mxu0 %v1003
  %1057 = vmatpush.msra.mxu0 %v1001
  %1058 = vmatpush.msra.mxu0 %v999
  %1059 = vmatmul.f32.gmra.mxu0 %v1021
  %v1060 = vpop.f32.mrf.mxu0
  %v1061 = vadd.f32 %v1017, %v1060
  %1062 = vdwg.mxu0
  %v1065 = vrot.slane %v1041, 7
  %v1066 = vrot.slane %v1061, 7
  %v1069 = vsel %vm115, %v1041, %v1065
  %v1070 = vsel %vm116, %v1061, %v1066
  %v1071 = vrot.slane %v1041, 5
  %v1072 = vrot.slane %v1061, 5
  %v1075 = vsel %vm115, %v1041, %v1071
  %v1076 = vsel %vm116, %v1061, %v1072
  %v1077 = vrot.slane %v1041, 3
  %v1078 = vrot.slane %v1061, 3
  %v1081 = vsel %vm115, %v1041, %v1077
  %v1082 = vsel %vm116, %v1061, %v1078
  %v1083 = vrot.slane %v1041, 1
  %v1084 = vrot.slane %v1061, 1
  %v1087 = vsel %vm115, %v1041, %v1083
  %v1088 = vsel %vm116, %v1061, %v1084
  %v1089 = vld [vmem:[%s5] sm:$0xff]
  %v1090 = vld [vmem:[%s5 + $0x8] sm:$0xff]
  %v1091 = vld [vmem:[%s5 + $0x10] sm:$0xff]
  %v1092 = vld [vmem:[%s5 + $0x18] sm:$0xff]
  %v1093 = vld [vmem:[%s5 + $0x20] sm:$0xff]
  %v1094 = vld [vmem:[%s5 + $0x28] sm:$0xff]
  %v1095 = vld [vmem:[%s5 + $0x30] sm:$0xff]
  %v1096 = vld [vmem:[%s5 + $0x38] sm:$0xff]
  %v1097 = vld [vmem:[%s5 + $0x40] sm:$0xff]
  %v1098 = vld [vmem:[%s5 + $0x48] sm:$0xff]
  %v1099 = vld [vmem:[%s5 + $0x50] sm:$0xff]
  %v1100 = vld [vmem:[%s5 + $0x58] sm:$0xff]
  %v1101 = vld [vmem:[%s5 + $0x60] sm:$0xff]
  %v1102 = vld [vmem:[%s5 + $0x68] sm:$0xff]
  %v1103 = vld [vmem:[%s5 + $0x70] sm:$0xff]
  %v1104 = vld [vmem:[%s5 + $0x78] sm:$0xff]
  %v1105 = vpack.c.bf16 %v1091, %v1089
  %v1106 = vpack.c.bf16 %v1092, %v1090
  %v1107 = vpack.c.bf16 %v1095, %v1093
  %v1108 = vpack.c.bf16 %v1096, %v1094
  %v1109 = vpack.c.bf16 %v1099, %v1097
  %v1110 = vpack.c.bf16 %v1100, %v1098
  %v1111 = vpack.c.bf16 %v1103, %v1101
  %v1112 = vpack.c.bf16 %v1104, %v1102
  %1113 = vmatpush.bf16.msra.mxu0 0
  %1114 = vmatpush.bf16.msra.mxu0 0
  %1115 = vmatpush.bf16.msra.mxu0 0
  %1116 = vmatpush.bf16.msra.mxu0 0
  %1117 = vmatpush.bf16.msra.mxu0 %v1111
  %1118 = vmatpush.bf16.msra.mxu0 %v1109
  %1119 = vmatpush.bf16.msra.mxu0 %v1107
  %1120 = vmatpush.bf16.msra.mxu0 %v1105
  %1121 = vmatmul.bf16.gmra.mxu0 %v169
  %v1122 = vpop.f32.mrf.mxu0
  %v1123 = vadd.f32 0.0, %v1122
  %v1124 = vpop.f32.mrf.mxu0
  %1125 = vdwg.mxu0
  %1126 = vmatpush.bf16.msra.mxu0 0
  %1127 = vmatpush.bf16.msra.mxu0 0
  %1128 = vmatpush.bf16.msra.mxu0 0
  %1129 = vmatpush.bf16.msra.mxu0 0
  %1130 = vmatpush.bf16.msra.mxu0 %v1112
  %1131 = vmatpush.bf16.msra.mxu0 %v1110
  %1132 = vmatpush.bf16.msra.mxu0 %v1108
  %1133 = vmatpush.bf16.msra.mxu0 %v1106
  %1134 = vmatmul.bf16.gmra.mxu0 %v169
  %v1135 = vpop.f32.mrf.mxu0
  %v1136 = vadd.f32 0.0, %v1135
  %v1137 = vpop.f32.mrf.mxu0
  %1138 = vdwg.mxu0
  %v1139 = vadd.f32 %v1069, %v1123
  %v1140 = vadd.f32 %v1070, %v1136
  %v1141 = vxor.u32 %v1139, 2147483648
  %v1142 = vxor.u32 %v1140, 2147483648
  %v1143 = vmul.f32 %v1141, 1.442695
  %v1144 = vpow.pop %v1143
  %v1145 = vmul.f32 %v1142, 1.442695
  %v1146 = vpow.pop %v1145
  %v1147 = vadd.f32 %v1144, 1.0
  %v1148 = vadd.f32 %v1146, 1.0
  %v1149 = vrcp.pop %v1147
  %v1150 = vmul.f32 %v1147, %v1149
  %v1151 = vsub.f32 1.0, %v1150
  %v1152 = vmul.f32 %v1149, %v1151
  %v1153 = vadd.f32 %v1149, %v1152
  %vm1154 = vweird.f32 %v1147
  %vm1155 = vweird.f32 %v1149
  %vm1156 = vmor %vm1154, %vm1155
  %v1157 = vsel %vm1156, %v1149, %v1153
  %v1158 = vand.u32 2147483647, %v1147
  %vm1159 = vcmp.eq.f32.partialorder %v1158, 8.507059e+37
  %v1160 = vand.u32 %v1147, 2147483648
  %v1161 = vor.u32 1.1754944e-38, %v1160
  %v1162 = vsel %vm1159, %v1161, %v1157
  %v1163 = vmul.f32 1.0, %v1162
  %v1164 = vrcp.pop %v1148
  %v1165 = vmul.f32 %v1148, %v1164
  %v1166 = vsub.f32 1.0, %v1165
  %v1167 = vmul.f32 %v1164, %v1166
  %v1168 = vadd.f32 %v1164, %v1167
  %vm1169 = vweird.f32 %v1148
  %vm1170 = vweird.f32 %v1164
  %vm1171 = vmor %vm1169, %vm1170
  %v1172 = vsel %vm1171, %v1164, %v1168
  %v1173 = vand.u32 2147483647, %v1148
  %vm1174 = vcmp.eq.f32.partialorder %v1173, 8.507059e+37
  %v1175 = vand.u32 %v1148, 2147483648
  %v1176 = vor.u32 1.1754944e-38, %v1175
  %v1177 = vsel %vm1174, %v1176, %v1172
  %v1178 = vmul.f32 1.0, %v1177
  %v1179 = vtanh.pop %v1140
  %v1180 = vmul.f32 %v1163, 0.0
  %1182 = vrot.lane.b32.xlu0 %v1179, 64
  %v1183 = vpop.permute.xlu0 %1182
  %v1185 = vmul.f32 %v1163, %v1183
  %1187 = vrot.lane.b32.xlu0 %v1185, 64
  %v1188 = vpop.permute.xlu0 %1187
  %v1190 = vadd.f32 %v1180, %v1188
  %v1191 = vtanh.pop %v1190
  %1193 = vrot.lane.b32.xlu0 %v1191, 64
  %v1194 = vpop.permute.xlu0 %1193
  %v1196 = vmul.f32 %v1178, %v1194
  %v1197 = vpack.c.bf16 %v1196, %v1196
  %v1199 = vsel %vm167, %v1197, 0
  %1201 = vmatpush.bf16.msra.mxu0 0
  %1202 = vmatpush.bf16.msra.mxu0 0
  %1203 = vmatpush.bf16.msra.mxu0 0
  %1204 = vmatpush.bf16.msra.mxu0 0
  %1205 = vmatpush.bf16.msra.mxu0 %v1111
  %1206 = vmatpush.bf16.msra.mxu0 %v1109
  %1207 = vmatpush.bf16.msra.mxu0 %v1107
  %1208 = vmatpush.bf16.msra.mxu0 %v1105
  %1209 = vmatmul.bf16.gmra.mxu0 %v1199
  %v1210 = vpop.f32.mrf.mxu0
  %v1211 = vadd.f32 0.0, %v1210
  %v1212 = vpop.f32.mrf.mxu0
  %1213 = vdwg.mxu0
  %1214 = vmatpush.bf16.msra.mxu0 0
  %1215 = vmatpush.bf16.msra.mxu0 0
  %1216 = vmatpush.bf16.msra.mxu0 0
  %1217 = vmatpush.bf16.msra.mxu0 0
  %1218 = vmatpush.bf16.msra.mxu0 %v1112
  %1219 = vmatpush.bf16.msra.mxu0 %v1110
  %1220 = vmatpush.bf16.msra.mxu0 %v1108
  %1221 = vmatpush.bf16.msra.mxu0 %v1106
  %1222 = vmatmul.bf16.gmra.mxu0 %v1199
  %v1223 = vpop.f32.mrf.mxu0
  %v1224 = vadd.f32 0.0, %v1223
  %v1225 = vpop.f32.mrf.mxu0
  %1226 = vdwg.mxu0
  %v1229 = vrot.slane %v1211, 7
  %v1230 = vrot.slane %v1224, 7
  %v1233 = vadd.f32 %v1075, %v1229
  %v1234 = vadd.f32 %v1076, %v1230
  %v1235 = vxor.u32 %v1233, 2147483648
  %v1236 = vxor.u32 %v1234, 2147483648
  %v1237 = vmul.f32 %v1235, 1.442695
  %v1238 = vpow.pop %v1237
  %v1239 = vmul.f32 %v1236, 1.442695
  %v1240 = vpow.pop %v1239
  %v1241 = vadd.f32 %v1238, 1.0
  %v1242 = vadd.f32 %v1240, 1.0
  %v1243 = vrcp.pop %v1241
  %v1244 = vmul.f32 %v1241, %v1243
  %v1245 = vsub.f32 1.0, %v1244
  %v1246 = vmul.f32 %v1243, %v1245
  %v1247 = vadd.f32 %v1243, %v1246
  %vm1248 = vweird.f32 %v1241
  %vm1249 = vweird.f32 %v1243
  %vm1250 = vmor %vm1248, %vm1249
  %v1251 = vsel %vm1250, %v1243, %v1247
  %v1252 = vand.u32 2147483647, %v1241
  %vm1253 = vcmp.eq.f32.partialorder %v1252, 8.507059e+37
  %v1254 = vand.u32 %v1241, 2147483648
  %v1255 = vor.u32 1.1754944e-38, %v1254
  %v1256 = vsel %vm1253, %v1255, %v1251
  %v1257 = vmul.f32 1.0, %v1256
  %v1258 = vrcp.pop %v1242
  %v1259 = vmul.f32 %v1242, %v1258
  %v1260 = vsub.f32 1.0, %v1259
  %v1261 = vmul.f32 %v1258, %v1260
  %v1262 = vadd.f32 %v1258, %v1261
  %vm1263 = vweird.f32 %v1242
  %vm1264 = vweird.f32 %v1258
  %vm1265 = vmor %vm1263, %vm1264
  %v1266 = vsel %vm1265, %v1258, %v1262
  %v1267 = vand.u32 2147483647, %v1242
  %vm1268 = vcmp.eq.f32.partialorder %v1267, 8.507059e+37
  %v1269 = vand.u32 %v1242, 2147483648
  %v1270 = vor.u32 1.1754944e-38, %v1269
  %v1271 = vsel %vm1268, %v1270, %v1266
  %v1272 = vmul.f32 1.0, %v1271
  %v1273 = vtanh.pop %v1234
  %v1275 = vrot.slane %v1190, 7
  %v1277 = vmul.f32 %v1257, %v1275
  %1279 = vrot.lane.b32.xlu0 %v1273, 64
  %v1280 = vpop.permute.xlu0 %1279
  %v1282 = vmul.f32 %v1257, %v1280
  %1284 = vrot.lane.b32.xlu0 %v1282, 64
  %v1285 = vpop.permute.xlu0 %1284
  %v1287 = vadd.f32 %v1277, %v1285
  %v1288 = vtanh.pop %v1287
  %1290 = vrot.lane.b32.xlu0 %v1288, 64
  %v1291 = vpop.permute.xlu0 %1290
  %v1293 = vmul.f32 %v1272, %v1291
  %v1294 = vpack.c.bf16 %v1293, %v1293
  %v1296 = vshrl.u32 %v1294, 16
  %v1299 = vsel %vm167, %v1296, 0
  %1301 = vmatpush.bf16.msra.mxu0 0
  %1302 = vmatpush.bf16.msra.mxu0 0
  %1303 = vmatpush.bf16.msra.mxu0 0
  %1304 = vmatpush.bf16.msra.mxu0 0
  %1305 = vmatpush.bf16.msra.mxu0 %v1111
  %1306 = vmatpush.bf16.msra.mxu0 %v1109
  %1307 = vmatpush.bf16.msra.mxu0 %v1107
  %1308 = vmatpush.bf16.msra.mxu0 %v1105
  %1309 = vmatmul.bf16.gmra.mxu0 %v1299
  %v1310 = vpop.f32.mrf.mxu0
  %v1311 = vadd.f32 0.0, %v1310
  %v1312 = vpop.f32.mrf.mxu0
  %1313 = vdwg.mxu0
  %1314 = vmatpush.bf16.msra.mxu0 0
  %1315 = vmatpush.bf16.msra.mxu0 0
  %1316 = vmatpush.bf16.msra.mxu0 0
  %1317 = vmatpush.bf16.msra.mxu0 0
  %1318 = vmatpush.bf16.msra.mxu0 %v1112
  %1319 = vmatpush.bf16.msra.mxu0 %v1110
  %1320 = vmatpush.bf16.msra.mxu0 %v1108
  %1321 = vmatpush.bf16.msra.mxu0 %v1106
  %1322 = vmatmul.bf16.gmra.mxu0 %v1299
  %v1323 = vpop.f32.mrf.mxu0
  %v1324 = vadd.f32 0.0, %v1323
  %v1325 = vpop.f32.mrf.mxu0
  %1326 = vdwg.mxu0
  %v1329 = vrot.slane %v1311, 6
  %v1330 = vrot.slane %v1324, 6
  %v1333 = vadd.f32 %v1081, %v1329
  %v1334 = vadd.f32 %v1082, %v1330
  %v1335 = vxor.u32 %v1333, 2147483648
  %v1336 = vxor.u32 %v1334, 2147483648
  %v1337 = vmul.f32 %v1335, 1.442695
  %v1338 = vpow.pop %v1337
  %v1339 = vmul.f32 %v1336, 1.442695
  %v1340 = vpow.pop %v1339
  %v1341 = vadd.f32 %v1338, 1.0
  %v1342 = vadd.f32 %v1340, 1.0
  %v1343 = vrcp.pop %v1341
  %v1344 = vmul.f32 %v1341, %v1343
  %v1345 = vsub.f32 1.0, %v1344
  %v1346 = vmul.f32 %v1343, %v1345
  %v1347 = vadd.f32 %v1343, %v1346
  %vm1348 = vweird.f32 %v1341
  %vm1349 = vweird.f32 %v1343
  %vm1350 = vmor %vm1348, %vm1349
  %v1351 = vsel %vm1350, %v1343, %v1347
  %v1352 = vand.u32 2147483647, %v1341
  %vm1353 = vcmp.eq.f32.partialorder %v1352, 8.507059e+37
  %v1354 = vand.u32 %v1341, 2147483648
  %v1355 = vor.u32 1.1754944e-38, %v1354
  %v1356 = vsel %vm1353, %v1355, %v1351
  %v1357 = vmul.f32 1.0, %v1356
  %v1358 = vrcp.pop %v1342
  %v1359 = vmul.f32 %v1342, %v1358
  %v1360 = vsub.f32 1.0, %v1359
  %v1361 = vmul.f32 %v1358, %v1360
  %v1362 = vadd.f32 %v1358, %v1361
  %vm1363 = vweird.f32 %v1342
  %vm1364 = vweird.f32 %v1358
  %vm1365 = vmor %vm1363, %vm1364
  %v1366 = vsel %vm1365, %v1358, %v1362
  %v1367 = vand.u32 2147483647, %v1342
  %vm1368 = vcmp.eq.f32.partialorder %v1367, 8.507059e+37
  %v1369 = vand.u32 %v1342, 2147483648
  %v1370 = vor.u32 1.1754944e-38, %v1369
  %v1371 = vsel %vm1368, %v1370, %v1366
  %v1372 = vmul.f32 1.0, %v1371
  %v1373 = vtanh.pop %v1334
  %v1375 = vrot.slane %v1287, 7
  %v1377 = vmul.f32 %v1357, %v1375
  %1379 = vrot.lane.b32.xlu0 %v1373, 64
  %v1380 = vpop.permute.xlu0 %1379
  %v1382 = vmul.f32 %v1357, %v1380
  %1384 = vrot.lane.b32.xlu0 %v1382, 64
  %v1385 = vpop.permute.xlu0 %1384
  %v1387 = vadd.f32 %v1377, %v1385
  %v1388 = vtanh.pop %v1387
  %1390 = vrot.lane.b32.xlu0 %v1388, 64
  %v1391 = vpop.permute.xlu0 %1390
  %v1393 = vmul.f32 %v1372, %v1391
  %v1394 = vpack.c.bf16 %v1393, %v1393
  %v1396 = vrot.slane %v1394, 1
  %v1398 = vsel %vm167, %v1396, 0
  %1400 = vmatpush.bf16.msra.mxu0 0
  %1401 = vmatpush.bf16.msra.mxu0 0
  %1402 = vmatpush.bf16.msra.mxu0 0
  %1403 = vmatpush.bf16.msra.mxu0 0
  %1404 = vmatpush.bf16.msra.mxu0 %v1111
  %1405 = vmatpush.bf16.msra.mxu0 %v1109
  %1406 = vmatpush.bf16.msra.mxu0 %v1107
  %1407 = vmatpush.bf16.msra.mxu0 %v1105
  %1408 = vmatmul.bf16.gmra.mxu0 %v1398
  %v1409 = vpop.f32.mrf.mxu0
  %v1410 = vadd.f32 0.0, %v1409
  %v1411 = vpop.f32.mrf.mxu0
  %1412 = vdwg.mxu0
  %1413 = vmatpush.bf16.msra.mxu0 0
  %1414 = vmatpush.bf16.msra.mxu0 0
  %1415 = vmatpush.bf16.msra.mxu0 0
  %1416 = vmatpush.bf16.msra.mxu0 0
  %1417 = vmatpush.bf16.msra.mxu0 %v1112
  %1418 = vmatpush.bf16.msra.mxu0 %v1110
  %1419 = vmatpush.bf16.msra.mxu0 %v1108
  %1420 = vmatpush.bf16.msra.mxu0 %v1106
  %1421 = vmatmul.bf16.gmra.mxu0 %v1398
  %v1422 = vpop.f32.mrf.mxu0
  %v1423 = vadd.f32 0.0, %v1422
  %v1424 = vpop.f32.mrf.mxu0
  %1425 = vdwg.mxu0
  %v1428 = vrot.slane %v1410, 5
  %v1429 = vrot.slane %v1423, 5
  %v1432 = vadd.f32 %v1087, %v1428
  %v1433 = vadd.f32 %v1088, %v1429
  %v1434 = vxor.u32 %v1432, 2147483648
  %v1435 = vxor.u32 %v1433, 2147483648
  %v1436 = vmul.f32 %v1434, 1.442695
  %v1437 = vpow.pop %v1436
  %v1438 = vmul.f32 %v1435, 1.442695
  %v1439 = vpow.pop %v1438
  %v1440 = vadd.f32 %v1437, 1.0
  %v1441 = vadd.f32 %v1439, 1.0
  %v1442 = vrcp.pop %v1440
  %v1443 = vmul.f32 %v1440, %v1442
  %v1444 = vsub.f32 1.0, %v1443
  %v1445 = vmul.f32 %v1442, %v1444
  %v1446 = vadd.f32 %v1442, %v1445
  %vm1447 = vweird.f32 %v1440
  %vm1448 = vweird.f32 %v1442
  %vm1449 = vmor %vm1447, %vm1448
  %v1450 = vsel %vm1449, %v1442, %v1446
  %v1451 = vand.u32 2147483647, %v1440
  %vm1452 = vcmp.eq.f32.partialorder %v1451, 8.507059e+37
  %v1453 = vand.u32 %v1440, 2147483648
  %v1454 = vor.u32 1.1754944e-38, %v1453
  %v1455 = vsel %vm1452, %v1454, %v1450
  %v1456 = vmul.f32 1.0, %v1455
  %v1457 = vrcp.pop %v1441
  %v1458 = vmul.f32 %v1441, %v1457
  %v1459 = vsub.f32 1.0, %v1458
  %v1460 = vmul.f32 %v1457, %v1459
  %v1461 = vadd.f32 %v1457, %v1460
  %vm1462 = vweird.f32 %v1441
  %vm1463 = vweird.f32 %v1457
  %vm1464 = vmor %vm1462, %vm1463
  %v1465 = vsel %vm1464, %v1457, %v1461
  %v1466 = vand.u32 2147483647, %v1441
  %vm1467 = vcmp.eq.f32.partialorder %v1466, 8.507059e+37
  %v1468 = vand.u32 %v1441, 2147483648
  %v1469 = vor.u32 1.1754944e-38, %v1468
  %v1470 = vsel %vm1467, %v1469, %v1465
  %v1471 = vmul.f32 1.0, %v1470
  %v1472 = vtanh.pop %v1433
  %v1474 = vrot.slane %v1387, 7
  %v1476 = vmul.f32 %v1456, %v1474
  %1478 = vrot.lane.b32.xlu0 %v1472, 64
  %v1479 = vpop.permute.xlu0 %1478
  %v1481 = vmul.f32 %v1456, %v1479
  %1483 = vrot.lane.b32.xlu0 %v1481, 64
  %v1484 = vpop.permute.xlu0 %1483
  %v1486 = vadd.f32 %v1476, %v1484
  %v1487 = vtanh.pop %v1486
  %1489 = vrot.lane.b32.xlu0 %v1487, 64
  %v1490 = vpop.permute.xlu0 %1489
  %v1492 = vmul.f32 %v1471, %v1490
  %v1493 = vpack.c.bf16 %v1492, %v1492
  %v1495 = vshrl.u32 %v1493, 16
  %v1497 = vrot.slane %v1495, 1
  %v1499 = vsel %vm167, %v1497, 0
  %1501 = vmatpush.bf16.msra.mxu0 0
  %1502 = vmatpush.bf16.msra.mxu0 0
  %1503 = vmatpush.bf16.msra.mxu0 0
  %1504 = vmatpush.bf16.msra.mxu0 0
  %1505 = vmatpush.bf16.msra.mxu0 %v1111
  %1506 = vmatpush.bf16.msra.mxu0 %v1109
  %1507 = vmatpush.bf16.msra.mxu0 %v1107
  %1508 = vmatpush.bf16.msra.mxu0 %v1105
  %1509 = vmatmul.bf16.gmra.mxu0 %v1499
  %v1510 = vpop.f32.mrf.mxu0
  %v1511 = vadd.f32 0.0, %v1510
  %v1512 = vpop.f32.mrf.mxu0
  %1513 = vdwg.mxu0
  %1514 = vmatpush.bf16.msra.mxu0 0
  %1515 = vmatpush.bf16.msra.mxu0 0
  %1516 = vmatpush.bf16.msra.mxu0 0
  %1517 = vmatpush.bf16.msra.mxu0 0
  %1518 = vmatpush.bf16.msra.mxu0 %v1112
  %1519 = vmatpush.bf16.msra.mxu0 %v1110
  %1520 = vmatpush.bf16.msra.mxu0 %v1108
  %1521 = vmatpush.bf16.msra.mxu0 %v1106
  %1522 = vmatmul.bf16.gmra.mxu0 %v1499
  %v1523 = vpop.f32.mrf.mxu0
  %v1524 = vadd.f32 0.0, %v1523
  %v1525 = vpop.f32.mrf.mxu0
  %1526 = vdwg.mxu0
  %v1529 = vrot.slane %v1511, 4
  %v1530 = vrot.slane %v1524, 4
  %v1533 = vadd.f32 %v1069, %v1529
  %v1534 = vadd.f32 %v1070, %v1530
  %v1535 = vxor.u32 %v1533, 2147483648
  %v1536 = vxor.u32 %v1534, 2147483648
  %v1537 = vmul.f32 %v1535, 1.442695
  %v1538 = vpow.pop %v1537
  %v1539 = vmul.f32 %v1536, 1.442695
  %v1540 = vpow.pop %v1539
  %v1541 = vadd.f32 %v1538, 1.0
  %v1542 = vadd.f32 %v1540, 1.0
  %v1543 = vrcp.pop %v1541
  %v1544 = vmul.f32 %v1541, %v1543
  %v1545 = vsub.f32 1.0, %v1544
  %v1546 = vmul.f32 %v1543, %v1545
  %v1547 = vadd.f32 %v1543, %v1546
  %vm1548 = vweird.f32 %v1541
  %vm1549 = vweird.f32 %v1543
  %vm1550 = vmor %vm1548, %vm1549
  %v1551 = vsel %vm1550, %v1543, %v1547
  %v1552 = vand.u32 2147483647, %v1541
  %vm1553 = vcmp.eq.f32.partialorder %v1552, 8.507059e+37
  %v1554 = vand.u32 %v1541, 2147483648
  %v1555 = vor.u32 1.1754944e-38, %v1554
  %v1556 = vsel %vm1553, %v1555, %v1551
  %v1557 = vmul.f32 1.0, %v1556
  %v1558 = vrcp.pop %v1542
  %v1559 = vmul.f32 %v1542, %v1558
  %v1560 = vsub.f32 1.0, %v1559
  %v1561 = vmul.f32 %v1558, %v1560
  %v1562 = vadd.f32 %v1558, %v1561
  %vm1563 = vweird.f32 %v1542
  %vm1564 = vweird.f32 %v1558
  %vm1565 = vmor %vm1563, %vm1564
  %v1566 = vsel %vm1565, %v1558, %v1562
  %v1567 = vand.u32 2147483647, %v1542
  %vm1568 = vcmp.eq.f32.partialorder %v1567, 8.507059e+37
  %v1569 = vand.u32 %v1542, 2147483648
  %v1570 = vor.u32 1.1754944e-38, %v1569
  %v1571 = vsel %vm1568, %v1570, %v1566
  %v1572 = vmul.f32 1.0, %v1571
  %v1573 = vtanh.pop %v1534
  %v1575 = vrot.slane %v1486, 7
  %v1577 = vmul.f32 %v1557, %v1575
  %1579 = vrot.lane.b32.xlu0 %v1573, 64
  %v1580 = vpop.permute.xlu0 %1579
  %v1582 = vmul.f32 %v1557, %v1580
  %1584 = vrot.lane.b32.xlu0 %v1582, 64
  %v1585 = vpop.permute.xlu0 %1584
  %v1587 = vadd.f32 %v1577, %v1585
  %v1588 = vtanh.pop %v1587
  %1590 = vrot.lane.b32.xlu0 %v1588, 64
  %v1591 = vpop.permute.xlu0 %1590
  %v1593 = vmul.f32 %v1572, %v1591
  %v1594 = vpack.c.bf16 %v1593, %v1593
  %v1596 = vrot.slane %v1594, 2
  %v1598 = vsel %vm167, %v1596, 0
  %1600 = vmatpush.bf16.msra.mxu0 0
  %1601 = vmatpush.bf16.msra.mxu0 0
  %1602 = vmatpush.bf16.msra.mxu0 0
  %1603 = vmatpush.bf16.msra.mxu0 0
  %1604 = vmatpush.bf16.msra.mxu0 %v1111
  %1605 = vmatpush.bf16.msra.mxu0 %v1109
  %1606 = vmatpush.bf16.msra.mxu0 %v1107
  %1607 = vmatpush.bf16.msra.mxu0 %v1105
  %1608 = vmatmul.bf16.gmra.mxu0 %v1598
  %v1609 = vpop.f32.mrf.mxu0
  %v1610 = vadd.f32 0.0, %v1609
  %v1611 = vpop.f32.mrf.mxu0
  %1612 = vdwg.mxu0
  %1613 = vmatpush.bf16.msra.mxu0 0
  %1614 = vmatpush.bf16.msra.mxu0 0
  %1615 = vmatpush.bf16.msra.mxu0 0
  %1616 = vmatpush.bf16.msra.mxu0 0
  %1617 = vmatpush.bf16.msra.mxu0 %v1112
  %1618 = vmatpush.bf16.msra.mxu0 %v1110
  %1619 = vmatpush.bf16.msra.mxu0 %v1108
  %1620 = vmatpush.bf16.msra.mxu0 %v1106
  %1621 = vmatmul.bf16.gmra.mxu0 %v1598
  %v1622 = vpop.f32.mrf.mxu0
  %v1623 = vadd.f32 0.0, %v1622
  %v1624 = vpop.f32.mrf.mxu0
  %1625 = vdwg.mxu0
  %v1628 = vrot.slane %v1610, 3
  %v1629 = vrot.slane %v1623, 3
  %v1632 = vadd.f32 %v1075, %v1628
  %v1633 = vadd.f32 %v1076, %v1629
  %v1634 = vxor.u32 %v1632, 2147483648
  %v1635 = vxor.u32 %v1633, 2147483648
  %v1636 = vmul.f32 %v1634, 1.442695
  %v1637 = vpow.pop %v1636
  %v1638 = vmul.f32 %v1635, 1.442695
  %v1639 = vpow.pop %v1638
  %v1640 = vadd.f32 %v1637, 1.0
  %v1641 = vadd.f32 %v1639, 1.0
  %v1642 = vrcp.pop %v1640
  %v1643 = vmul.f32 %v1640, %v1642
  %v1644 = vsub.f32 1.0, %v1643
  %v1645 = vmul.f32 %v1642, %v1644
  %v1646 = vadd.f32 %v1642, %v1645
  %vm1647 = vweird.f32 %v1640
  %vm1648 = vweird.f32 %v1642
  %vm1649 = vmor %vm1647, %vm1648
  %v1650 = vsel %vm1649, %v1642, %v1646
  %v1651 = vand.u32 2147483647, %v1640
  %vm1652 = vcmp.eq.f32.partialorder %v1651, 8.507059e+37
  %v1653 = vand.u32 %v1640, 2147483648
  %v1654 = vor.u32 1.1754944e-38, %v1653
  %v1655 = vsel %vm1652, %v1654, %v1650
  %v1656 = vmul.f32 1.0, %v1655
  %v1657 = vrcp.pop %v1641
  %v1658 = vmul.f32 %v1641, %v1657
  %v1659 = vsub.f32 1.0, %v1658
  %v1660 = vmul.f32 %v1657, %v1659
  %v1661 = vadd.f32 %v1657, %v1660
  %vm1662 = vweird.f32 %v1641
  %vm1663 = vweird.f32 %v1657
  %vm1664 = vmor %vm1662, %vm1663
  %v1665 = vsel %vm1664, %v1657, %v1661
  %v1666 = vand.u32 2147483647, %v1641
  %vm1667 = vcmp.eq.f32.partialorder %v1666, 8.507059e+37
  %v1668 = vand.u32 %v1641, 2147483648
  %v1669 = vor.u32 1.1754944e-38, %v1668
  %v1670 = vsel %vm1667, %v1669, %v1665
  %v1671 = vmul.f32 1.0, %v1670
  %v1672 = vtanh.pop %v1633
  %v1674 = vrot.slane %v1587, 7
  %v1676 = vmul.f32 %v1656, %v1674
  %1678 = vrot.lane.b32.xlu0 %v1672, 64
  %v1679 = vpop.permute.xlu0 %1678
  %v1681 = vmul.f32 %v1656, %v1679
  %1683 = vrot.lane.b32.xlu0 %v1681, 64
  %v1684 = vpop.permute.xlu0 %1683
  %v1686 = vadd.f32 %v1676, %v1684
  %v1687 = vtanh.pop %v1686
  %1689 = vrot.lane.b32.xlu0 %v1687, 64
  %v1690 = vpop.permute.xlu0 %1689
  %v1692 = vmul.f32 %v1671, %v1690
  %v1693 = vpack.c.bf16 %v1692, %v1692
  %v1695 = vshrl.u32 %v1693, 16
  %v1697 = vrot.slane %v1695, 2
  %v1699 = vsel %vm167, %v1697, 0
  %1701 = vmatpush.bf16.msra.mxu0 0
  %1702 = vmatpush.bf16.msra.mxu0 0
  %1703 = vmatpush.bf16.msra.mxu0 0
  %1704 = vmatpush.bf16.msra.mxu0 0
  %1705 = vmatpush.bf16.msra.mxu0 %v1111
  %1706 = vmatpush.bf16.msra.mxu0 %v1109
  %1707 = vmatpush.bf16.msra.mxu0 %v1107
  %1708 = vmatpush.bf16.msra.mxu0 %v1105
  %1709 = vmatmul.bf16.gmra.mxu0 %v1699
  %v1710 = vpop.f32.mrf.mxu0
  %v1711 = vadd.f32 0.0, %v1710
  %v1712 = vpop.f32.mrf.mxu0
  %1713 = vdwg.mxu0
  %1714 = vmatpush.bf16.msra.mxu0 0
  %1715 = vmatpush.bf16.msra.mxu0 0
  %1716 = vmatpush.bf16.msra.mxu0 0
  %1717 = vmatpush.bf16.msra.mxu0 0
  %1718 = vmatpush.bf16.msra.mxu0 %v1112
  %1719 = vmatpush.bf16.msra.mxu0 %v1110
  %1720 = vmatpush.bf16.msra.mxu0 %v1108
  %1721 = vmatpush.bf16.msra.mxu0 %v1106
  %1722 = vmatmul.bf16.gmra.mxu0 %v1699
  %v1723 = vpop.f32.mrf.mxu0
  %v1724 = vadd.f32 0.0, %v1723
  %v1725 = vpop.f32.mrf.mxu0
  %1726 = vdwg.mxu0
  %v1729 = vrot.slane %v1711, 2
  %v1730 = vrot.slane %v1724, 2
  %v1733 = vadd.f32 %v1081, %v1729
  %v1734 = vadd.f32 %v1082, %v1730
  %v1735 = vxor.u32 %v1733, 2147483648
  %v1736 = vxor.u32 %v1734, 2147483648
  %v1737 = vmul.f32 %v1735, 1.442695
  %v1738 = vpow.pop %v1737
  %v1739 = vmul.f32 %v1736, 1.442695
  %v1740 = vpow.pop %v1739
  %v1741 = vadd.f32 %v1738, 1.0
  %v1742 = vadd.f32 %v1740, 1.0
  %v1743 = vrcp.pop %v1741
  %v1744 = vmul.f32 %v1741, %v1743
  %v1745 = vsub.f32 1.0, %v1744
  %v1746 = vmul.f32 %v1743, %v1745
  %v1747 = vadd.f32 %v1743, %v1746
  %vm1748 = vweird.f32 %v1741
  %vm1749 = vweird.f32 %v1743
  %vm1750 = vmor %vm1748, %vm1749
  %v1751 = vsel %vm1750, %v1743, %v1747
  %v1752 = vand.u32 2147483647, %v1741
  %vm1753 = vcmp.eq.f32.partialorder %v1752, 8.507059e+37
  %v1754 = vand.u32 %v1741, 2147483648
  %v1755 = vor.u32 1.1754944e-38, %v1754
  %v1756 = vsel %vm1753, %v1755, %v1751
  %v1757 = vmul.f32 1.0, %v1756
  %v1758 = vrcp.pop %v1742
  %v1759 = vmul.f32 %v1742, %v1758
  %v1760 = vsub.f32 1.0, %v1759
  %v1761 = vmul.f32 %v1758, %v1760
  %v1762 = vadd.f32 %v1758, %v1761
  %vm1763 = vweird.f32 %v1742
  %vm1764 = vweird.f32 %v1758
  %vm1765 = vmor %vm1763, %vm1764
  %v1766 = vsel %vm1765, %v1758, %v1762
  %v1767 = vand.u32 2147483647, %v1742
  %vm1768 = vcmp.eq.f32.partialorder %v1767, 8.507059e+37
  %v1769 = vand.u32 %v1742, 2147483648
  %v1770 = vor.u32 1.1754944e-38, %v1769
  %v1771 = vsel %vm1768, %v1770, %v1766
  %v1772 = vmul.f32 1.0, %v1771
  %v1773 = vtanh.pop %v1734
  %v1775 = vrot.slane %v1686, 7
  %v1777 = vmul.f32 %v1757, %v1775
  %1779 = vrot.lane.b32.xlu0 %v1773, 64
  %v1780 = vpop.permute.xlu0 %1779
  %v1782 = vmul.f32 %v1757, %v1780
  %1784 = vrot.lane.b32.xlu0 %v1782, 64
  %v1785 = vpop.permute.xlu0 %1784
  %v1787 = vadd.f32 %v1777, %v1785
  %v1788 = vtanh.pop %v1787
  %1790 = vrot.lane.b32.xlu0 %v1788, 64
  %v1791 = vpop.permute.xlu0 %1790
  %v1793 = vmul.f32 %v1772, %v1791
  %v1794 = vpack.c.bf16 %v1793, %v1793
  %v1796 = vrot.slane %v1794, 3
  %v1798 = vsel %vm167, %v1796, 0
  %1800 = vmatpush.bf16.msra.mxu0 0
  %1801 = vmatpush.bf16.msra.mxu0 0
  %1802 = vmatpush.bf16.msra.mxu0 0
  %1803 = vmatpush.bf16.msra.mxu0 0
  %1804 = vmatpush.bf16.msra.mxu0 %v1111
  %1805 = vmatpush.bf16.msra.mxu0 %v1109
  %1806 = vmatpush.bf16.msra.mxu0 %v1107
  %1807 = vmatpush.bf16.msra.mxu0 %v1105
  %1808 = vmatmul.bf16.gmra.mxu0 %v1798
  %v1809 = vpop.f32.mrf.mxu0
  %v1810 = vadd.f32 0.0, %v1809
  %v1811 = vpop.f32.mrf.mxu0
  %1812 = vdwg.mxu0
  %1813 = vmatpush.bf16.msra.mxu0 0
  %1814 = vmatpush.bf16.msra.mxu0 0
  %1815 = vmatpush.bf16.msra.mxu0 0
  %1816 = vmatpush.bf16.msra.mxu0 0
  %1817 = vmatpush.bf16.msra.mxu0 %v1112
  %1818 = vmatpush.bf16.msra.mxu0 %v1110
  %1819 = vmatpush.bf16.msra.mxu0 %v1108
  %1820 = vmatpush.bf16.msra.mxu0 %v1106
  %1821 = vmatmul.bf16.gmra.mxu0 %v1798
  %v1822 = vpop.f32.mrf.mxu0
  %v1823 = vadd.f32 0.0, %v1822
  %v1824 = vpop.f32.mrf.mxu0
  %1825 = vdwg.mxu0
  %v1828 = vrot.slane %v1810, 1
  %v1829 = vrot.slane %v1823, 1
  %v1832 = vadd.f32 %v1087, %v1828
  %v1833 = vadd.f32 %v1088, %v1829
  %v1834 = vxor.u32 %v1832, 2147483648
  %v1835 = vxor.u32 %v1833, 2147483648
  %v1836 = vmul.f32 %v1834, 1.442695
  %v1837 = vpow.pop %v1836
  %v1838 = vmul.f32 %v1835, 1.442695
  %v1839 = vpow.pop %v1838
  %v1840 = vadd.f32 %v1837, 1.0
  %v1841 = vadd.f32 %v1839, 1.0
  %v1842 = vrcp.pop %v1840
  %v1843 = vmul.f32 %v1840, %v1842
  %v1844 = vsub.f32 1.0, %v1843
  %v1845 = vmul.f32 %v1842, %v1844
  %v1846 = vadd.f32 %v1842, %v1845
  %vm1847 = vweird.f32 %v1840
  %vm1848 = vweird.f32 %v1842
  %vm1849 = vmor %vm1847, %vm1848
  %v1850 = vsel %vm1849, %v1842, %v1846
  %v1851 = vand.u32 2147483647, %v1840
  %vm1852 = vcmp.eq.f32.partialorder %v1851, 8.507059e+37
  %v1853 = vand.u32 %v1840, 2147483648
  %v1854 = vor.u32 1.1754944e-38, %v1853
  %v1855 = vsel %vm1852, %v1854, %v1850
  %v1856 = vmul.f32 1.0, %v1855
  %v1857 = vrcp.pop %v1841
  %v1858 = vmul.f32 %v1841, %v1857
  %v1859 = vsub.f32 1.0, %v1858
  %v1860 = vmul.f32 %v1857, %v1859
  %v1861 = vadd.f32 %v1857, %v1860
  %vm1862 = vweird.f32 %v1841
  %vm1863 = vweird.f32 %v1857
  %vm1864 = vmor %vm1862, %vm1863
  %v1865 = vsel %vm1864, %v1857, %v1861
  %v1866 = vand.u32 2147483647, %v1841
  %vm1867 = vcmp.eq.f32.partialorder %v1866, 8.507059e+37
  %v1868 = vand.u32 %v1841, 2147483648
  %v1869 = vor.u32 1.1754944e-38, %v1868
  %v1870 = vsel %vm1867, %v1869, %v1865
  %v1871 = vmul.f32 1.0, %v1870
  %v1872 = vtanh.pop %v1833
  %v1874 = vrot.slane %v1787, 7
  %v1876 = vmul.f32 %v1856, %v1874
  %1878 = vrot.lane.b32.xlu0 %v1872, 64
  %v1879 = vpop.permute.xlu0 %1878
  %v1881 = vmul.f32 %v1856, %v1879
  %1883 = vrot.lane.b32.xlu0 %v1881, 64
  %v1884 = vpop.permute.xlu0 %1883
  %v1886 = vadd.f32 %v1876, %v1884
  %v1887 = vtanh.pop %v1886
  %1889 = vrot.lane.b32.xlu0 %v1887, 64
  %v1890 = vpop.permute.xlu0 %1889
  %v1892 = vmul.f32 %v1871, %v1890
  %v1893 = vsel %vm951, %v1196, %v1293
  %v1894 = vsel %vm953, %v1893, %v1393
  %v1895 = vsel %vm955, %v1894, %v1492
  %v1896 = vsel %vm957, %v1895, %v1593
  %v1897 = vsel %vm959, %v1896, %v1692
  %v1898 = vsel %vm961, %v1897, %v1793
  %v1899 = vsel %vm963, %v1898, %v1892
  %v1901 = vrot.slane %v1892, 7
  %v1904 = vrot.slane %v1793, 5
  %v1907 = vrot.slane %v1692, 3
  %v1910 = vrot.slane %v1593, 1
  %v1913 = vrot.slane %v1492, 7
  %v1916 = vrot.slane %v1393, 5
  %v1919 = vrot.slane %v1293, 3
  %v1922 = vrot.slane %v1196, 1
  %v1924 = vsel %vm951, %v1901, %v1904
  %v1925 = vsel %vm953, %v1924, %v1907
  %v1926 = vsel %vm955, %v1925, %v1910
  %v1927 = vsel %vm957, %v1926, %v1913
  %v1928 = vsel %vm959, %v1927, %v1916
  %v1929 = vsel %vm961, %v1928, %v1919
  %v1930 = vsel %vm963, %v1929, %v1922
  %v1931 = vsel %vm996, %v1899, %v1930
  %v1932 = vld [vmem:[%s7] sm:$0xff]
  %v1933 = vld [vmem:[%s7 + $0x8] sm:$0xff]
  %v1934 = vld [vmem:[%s7 + $0x10] sm:$0xff]
  %v1935 = vld [vmem:[%s7 + $0x18] sm:$0xff]
  %v1936 = vld [vmem:[%s7 + $0x20] sm:$0xff]
  %v1937 = vld [vmem:[%s7 + $0x28] sm:$0xff]
  %v1938 = vld [vmem:[%s7 + $0x30] sm:$0xff]
  %v1939 = vld [vmem:[%s7 + $0x38] sm:$0xff]
  %v1940 = vld [vmem:[%s8] sm:$0x1]
  %v1942 = vperm.slane %v1940, 0
  %v1945 = vsel %vm167, %v1931, 0
  %1947 = vmatpush.msra.mxu0 0.0
  %1948 = vmatpush.msra.mxu0 0.0
  %1949 = vmatpush.msra.mxu0 0.0
  %1950 = vmatpush.msra.mxu0 0.0
  %1951 = vmatpush.msra.mxu0 0.0
  %1952 = vmatpush.msra.mxu0 0.0
  %1953 = vmatpush.msra.mxu0 0.0
  %1954 = vmatpush.msra.mxu0 0.0
  %1955 = vmatpush.msra.mxu0 %v1939
  %1956 = vmatpush.msra.mxu0 %v1938
  %1957 = vmatpush.msra.mxu0 %v1937
  %1958 = vmatpush.msra.mxu0 %v1936
  %1959 = vmatpush.msra.mxu0 %v1935
  %1960 = vmatpush.msra.mxu0 %v1934
  %1961 = vmatpush.msra.mxu0 %v1933
  %1962 = vmatpush.msra.mxu0 %v1932
  %1963 = vmatmul.f32.gmra.mxu0 %v1945
  %v1964 = vpop.f32.mrf.mxu0
  %v1965 = vadd.f32 %v1942, %v1964
  %1966 = vdwg.mxu0
  %v1967 = vxor.u32 %v1965, 2147483648
  %v1968 = vmul.f32 %v1967, 1.442695
  %v1969 = vpow.pop %v1968
  %v1970 = vadd.f32 %v1969, 1.0
  %v1971 = vrcp.pop %v1970
  %v1972 = vmul.f32 %v1970, %v1971
  %v1973 = vsub.f32 1.0, %v1972
  %v1974 = vmul.f32 %v1971, %v1973
  %v1975 = vadd.f32 %v1971, %v1974
  %vm1976 = vweird.f32 %v1970
  %vm1977 = vweird.f32 %v1971
  %vm1978 = vmor %vm1976, %vm1977
  %v1979 = vsel %vm1978, %v1971, %v1975
  %v1980 = vand.u32 2147483647, %v1970
  %vm1981 = vcmp.eq.f32.partialorder %v1980, 8.507059e+37
  %v1982 = vand.u32 %v1970, 2147483648
  %v1983 = vor.u32 1.1754944e-38, %v1982
  %v1984 = vsel %vm1981, %v1983, %v1979
  %v1985 = vmul.f32 1.0, %v1984
  %1986 = vst [vmem:[%s9] sm:$0xff] %v1985
  // Predicated region
  $region38: #{csnet_forward.1} parent=0 // pred_check
    _
  $region39: #{csnet_forward.1} parent=0 // pred_check_branch
    %1988 = sbr.rel (0) target = $region41
  $region40: #{csnet_forward.1} parent=0 // pred_region
    _
  $region41: #{csnet_forward.1} parent=0 // pred_fallthru
    _
  // Predicated region
  $region42: #{csnet_forward.1} parent=0 // pred_check
    _
  $region43: #{csnet_forward.1} parent=0 // pred_check_branch
    %1990 = sbr.rel (0) target = $region45
  $region44: #{csnet_forward.1} parent=0 // pred_region
    _
  $region45: #{csnet_forward.1} parent=0 // pred_fallthru
    _

</llo_original>
